<compile_context>
chip_gen: v6e
topology: v6e:2x2x1
jax: 0.10.0
libtpu: 0.0.40
codegen_flags: <defaults>
</compile_context>

<pallas_src>
import functools

import jax
import jax.numpy as jnp
from jax.experimental import pallas as pl
from jax.experimental.pallas import tpu as pltpu

_LANE = 128
_SUBLANE = 8
_VMEM_SPEC = pl.BlockSpec(memory_space=pltpu.MemorySpace.VMEM)


def _round_up(n, m):
    return ((n + m - 1) // m) * m


# ------------------------------ kernel ------------------------------------- #

def _fused_rnn_kernel(*refs, num_layers, T, Bp, Hp):
    """All RNN layers + final Linear in one kernel, wavefront-scheduled.

    refs layout (positional):
      x_ref                    : (T*Bp, Dp)    time-major, flattened, padded input
      layer 0:
        w_in0_ref              : (Dp, Hp)      W_ih^T, zero-padded
        w_hh0_ref              : (Hp, Hp)      W_hh^T, zero-padded
        b0_ref                 : (1, Hp)       b_ih + b_hh, zero-padded
      per layer l = 1..L-1:
        w_fused_ref            : (2*Hp, Hp)    [W_ih^T ; W_hh^T], zero-padded
        b_ref                  : (1, Hp)
      fc_w_ref                 : (Hp, Op)      W_fc^T, zero-padded
      fc_b_ref                 : (1, Op)
      out_ref                  : (Bp, Op)
    """
    x_ref = refs[0]
    w_in0_ref, w_hh0_ref, b0_ref = refs[1], refs[2], refs[3]
    idx = 4
    fused_refs = []
    for _ in range(num_layers - 1):
        fused_refs.append((refs[idx], refs[idx + 1]))
        idx += 2
    fc_w_ref, fc_b_ref = refs[idx], refs[idx + 1]
    out_ref = refs[idx + 2]

    # Hoisted layer-0 input projection for ALL timesteps: one big MXU matmul,
    # off the serial recurrence path.  (T*Bp, Dp) @ (Dp, Hp) + bias.
    proj0 = (jnp.dot(x_ref[...], w_in0_ref[...],
                     preferred_element_type=jnp.float32)
             + b0_ref[...])                                        # (T*Bp, Hp)

    # h0 = torch.ones(...); padded H columns become exactly 0 after step 0
    # because the padded weight rows/columns and bias entries are 0.
    h = [jnp.ones((Bp, Hp), jnp.float32) for _ in range(num_layers)]

    # Wavefront over (layer, time): wave step s -> layer l handles t = s - l.
    # Layer l at time t needs h^{l-1}_t (computed at wave step s-1) and
    # h^l_{t-1} (computed at wave step s-1), so all layers inside one wave
    # step are independent and can be co-scheduled across MXU/VPU/EUP slots.
    for s in range(T + num_layers - 1):
        h_prev = list(h)   # snapshot of all states entering this wave step
        for l in range(num_layers):
            t = s - l
            if not (0 <= t < T):
                continue
            if l == 0:
                pre = proj0[t * Bp:(t + 1) * Bp, :] + jnp.dot(
                    h_prev[0], w_hh0_ref[...],
                    preferred_element_type=jnp.float32)
            else:
                # Fused per-step projection: K = 2*Hp = 256 exactly fills the
                # v6e/v7x MXU; one pass instead of two dependent matmuls.
                xh = jnp.concatenate([h_prev[l - 1], h_prev[l]], axis=-1)
                w_ref, b_ref = fused_refs[l - 1]
                pre = jnp.dot(xh, w_ref[...],
                              preferred_element_type=jnp.float32) + b_ref[...]
            h[l] = jnp.tanh(pre)

    # Final Linear on the last layer's last-timestep hidden state.
    out_ref[...] = (jnp.dot(h[num_layers - 1], fc_w_ref[...],
                            preferred_element_type=jnp.float32)
                    + fc_b_ref[...])


# ------------------------------ param prep (one-time) ----------------------- #

def prepare_params(params, input_dim, hidden_dim):
    """One-time: pad/transpose weights into kernel layout.

    Hoisted out of the per-call forward path.  Keeps the invariant that all
    pad rows/columns of every weight and bias are exactly zero (required so
    the h0=ones pad lanes decay to 0 after the first step and never leak).
    """
    L = len(params["layers"])
    O = params["fc_w"].shape[0]
    Dp = _round_up(input_dim, _LANE)
    Hp = _round_up(hidden_dim, _LANE)
    Op = _round_up(O, _LANE)

    weights = []
    lp0 = params["layers"][0]
    w_in0 = jnp.zeros((Dp, Hp), jnp.float32).at[
        :input_dim, :hidden_dim].set(lp0["w_ih"].T)
    w_hh0 = jnp.zeros((Hp, Hp), jnp.float32).at[
        :hidden_dim, :hidden_dim].set(lp0["w_hh"].T)
    b0 = jnp.zeros((1, Hp), jnp.float32).at[
        0, :hidden_dim].set(lp0["b_ih"] + lp0["b_hh"])
    weights += [w_in0, w_hh0, b0]

    for l in range(1, L):
        lp = params["layers"][l]
        w_f = jnp.zeros((2 * Hp, Hp), jnp.float32)
        w_f = w_f.at[:hidden_dim, :hidden_dim].set(lp["w_ih"].T)
        w_f = w_f.at[Hp:Hp + hidden_dim, :hidden_dim].set(lp["w_hh"].T)
        b = jnp.zeros((1, Hp), jnp.float32).at[
            0, :hidden_dim].set(lp["b_ih"] + lp["b_hh"])
        weights += [w_f, b]

    fc_w = jnp.zeros((Hp, Op), jnp.float32).at[
        :hidden_dim, :O].set(params["fc_w"].T)
    fc_b = jnp.zeros((1, Op), jnp.float32).at[0, :O].set(params["fc_b"])
    weights += [fc_w, fc_b]
    return tuple(weights)


# ------------------------------ forward ------------------------------------ #

@functools.partial(jax.jit,
                   static_argnames=("num_layers", "hidden_dim",
                                    "input_dim", "output_dim"))
def rnn_model_forward(x, weights, *, num_layers, hidden_dim, input_dim,
                      output_dim):
    """x: (B, T, input_dim) -> (B, output_dim). Single fused pallas_call."""
    B, T, _ = x.shape
    Bp = _round_up(B, _SUBLANE)
    Dp = _round_up(input_dim, _LANE)
    Hp = _round_up(hidden_dim, _LANE)
    Op = _round_up(output_dim, _LANE)

    # Time-major, batch-padded, lane-padded, flattened to (T*Bp, Dp).
    x_tm = jnp.transpose(x.astype(jnp.float32), (1, 0, 2))          # (T, B, D)
    x_tm = jnp.pad(x_tm, ((0, 0), (0, Bp - B), (0, Dp - input_dim)))
    x_flat = x_tm.reshape(T * Bp, Dp)

    kernel = functools.partial(_fused_rnn_kernel,
                               num_layers=num_layers, T=T, Bp=Bp, Hp=Hp)

    out_p = pl.pallas_call(
        kernel,
        out_shape=jax.ShapeDtypeStruct((Bp, Op), jnp.float32),
        in_specs=[_VMEM_SPEC] * (1 + len(weights)),
        out_specs=_VMEM_SPEC,
    )(x_flat, *weights)

    return out_p[:B, :output_dim]


# ------------------------------ params / reference -------------------------- #

def init_params(key, input_dim, hidden_dim, layer_dim, output_dim):
    """Deterministic parameter init mirroring nn.RNN/nn.Linear shapes."""
    params = {"layers": []}
    scale = 1.0 / jnp.sqrt(jnp.float32(hidden_dim))
    for l in range(layer_dim):
        d_in = input_dim if l == 0 else hidden_dim
        key, k1, k2, k3, k4 = jax.random.split(key, 5)
        w_ih = jax.random.uniform(k1, (hidden_dim, d_in), jnp.float32, -scale, scale)
        w_hh = jax.random.uniform(k2, (hidden_dim, hidden_dim), jnp.float32, -scale, scale)
        b_ih = jax.random.uniform(k3, (hidden_dim,), jnp.float32, -scale, scale)
        b_hh = jax.random.uniform(k4, (hidden_dim,), jnp.float32, -scale, scale)
        params["layers"].append(dict(w_ih=w_ih, w_hh=w_hh, b_ih=b_ih, b_hh=b_hh))
    key, k5, k6 = jax.random.split(key, 3)
    params["fc_w"] = jax.random.uniform(k5, (output_dim, hidden_dim), jnp.float32, -scale, scale)
    params["fc_b"] = jax.random.uniform(k6, (output_dim,), jnp.float32, -scale, scale)
    return params


def rnn_model_reference(x, params, hidden_dim):
    """Pure-JAX reference of the same forward pass (for validation)."""
    B = x.shape[0]
    seq = jnp.transpose(x, (1, 0, 2)).astype(jnp.float32)
    for lp in params["layers"]:
        h = jnp.ones((B, hidden_dim), jnp.float32)
        outs = []
        for t in range(seq.shape[0]):
            h = jnp.tanh(seq[t] @ lp["w_ih"].T + lp["b_ih"]
                         + h @ lp["w_hh"].T + lp["b_hh"])
            outs.append(h)
        seq = jnp.stack(outs, axis=0)
    return seq[-1] @ params["fc_w"].T + params["fc_b"]


# -------------------------------- main -------------------------------------- #

if __name__ == "__main__":
    input_dim, hidden_dim, layer_dim, output_dim = 16, 32, 2, 4
    B, T = 2, 8

    key = jax.random.PRNGKey(0)
    key, kx = jax.random.split(key)
    x = jax.random.normal(kx, (B, T, input_dim), jnp.float32)

    params = init_params(key, input_dim, hidden_dim, layer_dim, output_dim)

    # One-time weight padding/transposition (hoisted out of the per-call path).
    weights = prepare_params(params, input_dim, hidden_dim)

    out = rnn_model_forward(x, weights,
                            num_layers=layer_dim, hidden_dim=hidden_dim,
                            input_dim=input_dim, output_dim=output_dim)
    out = jax.block_until_ready(out)

    ref = rnn_model_reference(x, params, hidden_dim)
    assert out.shape == (B, output_dim)
    assert jnp.allclose(out, ref, atol=1e-5, rtol=1e-5)

    print("KERNEL_OK")
</pallas_src>

<mosaic_0001>
module attributes {stable_mosaic.version = 11 : i64} {
  func.func @_fused_rnn_kernel(%arg0: memref<64x128xf32, #tpu.memory_space<vmem>>, %arg1: memref<128x128xf32, #tpu.memory_space<vmem>>, %arg2: memref<128x128xf32, #tpu.memory_space<vmem>>, %arg3: memref<1x128xf32, #tpu.memory_space<vmem>>, %arg4: memref<256x128xf32, #tpu.memory_space<vmem>>, %arg5: memref<1x128xf32, #tpu.memory_space<vmem>>, %arg6: memref<128x128xf32, #tpu.memory_space<vmem>>, %arg7: memref<1x128xf32, #tpu.memory_space<vmem>>, %arg8: memref<8x128xf32, #tpu.memory_space<vmem>>) attributes {dimension_semantics = [], scalar_prefetch = 0 : i64, scratch_operands = 0 : i64, tpu.core_type = #tpu.core_type<tc>} {
    %c0 = arith.constant 0 : index
    %c0_0 = arith.constant 0 : index
    %0 = vector.load %arg0[%c0, %c0_0] : memref<64x128xf32, #tpu.memory_space<vmem>>, vector<64x128xf32>
    %c0_1 = arith.constant 0 : index
    %c0_2 = arith.constant 0 : index
    %1 = vector.load %arg1[%c0_1, %c0_2] : memref<128x128xf32, #tpu.memory_space<vmem>>, vector<128x128xf32>
    %cst = arith.constant dense<0.000000e+00> : vector<64x128xf32>
    %2 = tpu.matmul %0, %1, %cst {dimension_numbers = #tpu.dot_dimension_numbers<[1], [0], [0], [1], [0, 0, 1, 1], [], []>} : vector<64x128xf32>, vector<128x128xf32>, vector<64x128xf32> -> vector<64x128xf32>
    %c0_3 = arith.constant 0 : index
    %c0_4 = arith.constant 0 : index
    %3 = vector.load %arg3[%c0_3, %c0_4] : memref<1x128xf32, #tpu.memory_space<vmem>>, vector<1x128xf32>
    %4 = vector.broadcast %3 : vector<1x128xf32> to vector<64x128xf32>
    %5 = arith.addf %2, %4 : vector<64x128xf32>
    %cst_5 = arith.constant 1.000000e+00 : f32
    %6 = vector.broadcast %cst_5 : f32 to vector<8x128xf32>
    %cst_6 = arith.constant 1.000000e+00 : f32
    %7 = vector.broadcast %cst_6 : f32 to vector<8x128xf32>
    %8 = vector.extract_strided_slice %5 {offsets = [0, 0], sizes = [8, 128], strides = [1, 1]} : vector<64x128xf32> to vector<8x128xf32>
    %c0_7 = arith.constant 0 : index
    %c0_8 = arith.constant 0 : index
    %9 = vector.load %arg2[%c0_7, %c0_8] : memref<128x128xf32, #tpu.memory_space<vmem>>, vector<128x128xf32>
    %cst_9 = arith.constant dense<0.000000e+00> : vector<8x128xf32>
    %10 = tpu.matmul %6, %9, %cst_9 {dimension_numbers = #tpu.dot_dimension_numbers<[1], [0], [0], [1], [0, 0, 1, 1], [], []>} : vector<8x128xf32>, vector<128x128xf32>, vector<8x128xf32> -> vector<8x128xf32>
    %11 = arith.addf %8, %10 : vector<8x128xf32>
    %12 = math.tanh %11 : vector<8x128xf32>
    %13 = vector.extract_strided_slice %5 {offsets = [8, 0], sizes = [8, 128], strides = [1, 1]} : vector<64x128xf32> to vector<8x128xf32>
    %c0_10 = arith.constant 0 : index
    %c0_11 = arith.constant 0 : index
    %14 = vector.load %arg2[%c0_10, %c0_11] : memref<128x128xf32, #tpu.memory_space<vmem>>, vector<128x128xf32>
    %cst_12 = arith.constant dense<0.000000e+00> : vector<8x128xf32>
    %15 = tpu.matmul %12, %14, %cst_12 {dimension_numbers = #tpu.dot_dimension_numbers<[1], [0], [0], [1], [0, 0, 1, 1], [], []>} : vector<8x128xf32>, vector<128x128xf32>, vector<8x128xf32> -> vector<8x128xf32>
    %16 = arith.addf %13, %15 : vector<8x128xf32>
    %17 = math.tanh %16 : vector<8x128xf32>
    %18 = tpu.concatenate %12, %7 in 1 : vector<8x128xf32>, vector<8x128xf32> -> vector<8x256xf32>
    %c0_13 = arith.constant 0 : index
    %c0_14 = arith.constant 0 : index
    %19 = vector.load %arg4[%c0_13, %c0_14] : memref<256x128xf32, #tpu.memory_space<vmem>>, vector<256x128xf32>
    %cst_15 = arith.constant dense<0.000000e+00> : vector<8x128xf32>
    %20 = tpu.matmul %18, %19, %cst_15 {dimension_numbers = #tpu.dot_dimension_numbers<[1], [0], [0], [1], [0, 0, 1, 1], [], []>} : vector<8x256xf32>, vector<256x128xf32>, vector<8x128xf32> -> vector<8x128xf32>
    %c0_16 = arith.constant 0 : index
    %c0_17 = arith.constant 0 : index
    %21 = vector.load %arg5[%c0_16, %c0_17] : memref<1x128xf32, #tpu.memory_space<vmem>>, vector<1x128xf32>
    %22 = vector.broadcast %21 : vector<1x128xf32> to vector<8x128xf32>
    %23 = arith.addf %20, %22 : vector<8x128xf32>
    %24 = math.tanh %23 : vector<8x128xf32>
    %25 = vector.extract_strided_slice %5 {offsets = [16, 0], sizes = [8, 128], strides = [1, 1]} : vector<64x128xf32> to vector<8x128xf32>
    %c0_18 = arith.constant 0 : index
    %c0_19 = arith.constant 0 : index
    %26 = vector.load %arg2[%c0_18, %c0_19] : memref<128x128xf32, #tpu.memory_space<vmem>>, vector<128x128xf32>
    %cst_20 = arith.constant dense<0.000000e+00> : vector<8x128xf32>
    %27 = tpu.matmul %17, %26, %cst_20 {dimension_numbers = #tpu.dot_dimension_numbers<[1], [0], [0], [1], [0, 0, 1, 1], [], []>} : vector<8x128xf32>, vector<128x128xf32>, vector<8x128xf32> -> vector<8x128xf32>
    %28 = arith.addf %25, %27 : vector<8x128xf32>
    %29 = math.tanh %28 : vector<8x128xf32>
    %30 = tpu.concatenate %17, %24 in 1 : vector<8x128xf32>, vector<8x128xf32> -> vector<8x256xf32>
    %c0_21 = arith.constant 0 : index
    %c0_22 = arith.constant 0 : index
    %31 = vector.load %arg4[%c0_21, %c0_22] : memref<256x128xf32, #tpu.memory_space<vmem>>, vector<256x128xf32>
    %cst_23 = arith.constant dense<0.000000e+00> : vector<8x128xf32>
    %32 = tpu.matmul %30, %31, %cst_23 {dimension_numbers = #tpu.dot_dimension_numbers<[1], [0], [0], [1], [0, 0, 1, 1], [], []>} : vector<8x256xf32>, vector<256x128xf32>, vector<8x128xf32> -> vector<8x128xf32>
    %c0_24 = arith.constant 0 : index
    %c0_25 = arith.constant 0 : index
    %33 = vector.load %arg5[%c0_24, %c0_25] : memref<1x128xf32, #tpu.memory_space<vmem>>, vector<1x128xf32>
    %34 = vector.broadcast %33 : vector<1x128xf32> to vector<8x128xf32>
    %35 = arith.addf %32, %34 : vector<8x128xf32>
    %36 = math.tanh %35 : vector<8x128xf32>
    %37 = vector.extract_strided_slice %5 {offsets = [24, 0], sizes = [8, 128], strides = [1, 1]} : vector<64x128xf32> to vector<8x128xf32>
    %c0_26 = arith.constant 0 : index
    %c0_27 = arith.constant 0 : index
    %38 = vector.load %arg2[%c0_26, %c0_27] : memref<128x128xf32, #tpu.memory_space<vmem>>, vector<128x128xf32>
    %cst_28 = arith.constant dense<0.000000e+00> : vector<8x128xf32>
    %39 = tpu.matmul %29, %38, %cst_28 {dimension_numbers = #tpu.dot_dimension_numbers<[1], [0], [0], [1], [0, 0, 1, 1], [], []>} : vector<8x128xf32>, vector<128x128xf32>, vector<8x128xf32> -> vector<8x128xf32>
    %40 = arith.addf %37, %39 : vector<8x128xf32>
    %41 = math.tanh %40 : vector<8x128xf32>
    %42 = tpu.concatenate %29, %36 in 1 : vector<8x128xf32>, vector<8x128xf32> -> vector<8x256xf32>
    %c0_29 = arith.constant 0 : index
    %c0_30 = arith.constant 0 : index
    %43 = vector.load %arg4[%c0_29, %c0_30] : memref<256x128xf32, #tpu.memory_space<vmem>>, vector<256x128xf32>
    %cst_31 = arith.constant dense<0.000000e+00> : vector<8x128xf32>
    %44 = tpu.matmul %42, %43, %cst_31 {dimension_numbers = #tpu.dot_dimension_numbers<[1], [0], [0], [1], [0, 0, 1, 1], [], []>} : vector<8x256xf32>, vector<256x128xf32>, vector<8x128xf32> -> vector<8x128xf32>
    %c0_32 = arith.constant 0 : index
    %c0_33 = arith.constant 0 : index
    %45 = vector.load %arg5[%c0_32, %c0_33] : memref<1x128xf32, #tpu.memory_space<vmem>>, vector<1x128xf32>
    %46 = vector.broadcast %45 : vector<1x128xf32> to vector<8x128xf32>
    %47 = arith.addf %44, %46 : vector<8x128xf32>
    %48 = math.tanh %47 : vector<8x128xf32>
    %49 = vector.extract_strided_slice %5 {offsets = [32, 0], sizes = [8, 128], strides = [1, 1]} : vector<64x128xf32> to vector<8x128xf32>
    %c0_34 = arith.constant 0 : index
    %c0_35 = arith.constant 0 : index
    %50 = vector.load %arg2[%c0_34, %c0_35] : memref<128x128xf32, #tpu.memory_space<vmem>>, vector<128x128xf32>
    %cst_36 = arith.constant dense<0.000000e+00> : vector<8x128xf32>
    %51 = tpu.matmul %41, %50, %cst_36 {dimension_numbers = #tpu.dot_dimension_numbers<[1], [0], [0], [1], [0, 0, 1, 1], [], []>} : vector<8x128xf32>, vector<128x128xf32>, vector<8x128xf32> -> vector<8x128xf32>
    %52 = arith.addf %49, %51 : vector<8x128xf32>
    %53 = math.tanh %52 : vector<8x128xf32>
    %54 = tpu.concatenate %41, %48 in 1 : vector<8x128xf32>, vector<8x128xf32> -> vector<8x256xf32>
    %c0_37 = arith.constant 0 : index
    %c0_38 = arith.constant 0 : index
    %55 = vector.load %arg4[%c0_37, %c0_38] : memref<256x128xf32, #tpu.memory_space<vmem>>, vector<256x128xf32>
    %cst_39 = arith.constant dense<0.000000e+00> : vector<8x128xf32>
    %56 = tpu.matmul %54, %55, %cst_39 {dimension_numbers = #tpu.dot_dimension_numbers<[1], [0], [0], [1], [0, 0, 1, 1], [], []>} : vector<8x256xf32>, vector<256x128xf32>, vector<8x128xf32> -> vector<8x128xf32>
    %c0_40 = arith.constant 0 : index
    %c0_41 = arith.constant 0 : index
    %57 = vector.load %arg5[%c0_40, %c0_41] : memref<1x128xf32, #tpu.memory_space<vmem>>, vector<1x128xf32>
    %58 = vector.broadcast %57 : vector<1x128xf32> to vector<8x128xf32>
    %59 = arith.addf %56, %58 : vector<8x128xf32>
    %60 = math.tanh %59 : vector<8x128xf32>
    %61 = vector.extract_strided_slice %5 {offsets = [40, 0], sizes = [8, 128], strides = [1, 1]} : vector<64x128xf32> to vector<8x128xf32>
    %c0_42 = arith.constant 0 : index
    %c0_43 = arith.constant 0 : index
    %62 = vector.load %arg2[%c0_42, %c0_43] : memref<128x128xf32, #tpu.memory_space<vmem>>, vector<128x128xf32>
    %cst_44 = arith.constant dense<0.000000e+00> : vector<8x128xf32>
    %63 = tpu.matmul %53, %62, %cst_44 {dimension_numbers = #tpu.dot_dimension_numbers<[1], [0], [0], [1], [0, 0, 1, 1], [], []>} : vector<8x128xf32>, vector<128x128xf32>, vector<8x128xf32> -> vector<8x128xf32>
    %64 = arith.addf %61, %63 : vector<8x128xf32>
    %65 = math.tanh %64 : vector<8x128xf32>
    %66 = tpu.concatenate %53, %60 in 1 : vector<8x128xf32>, vector<8x128xf32> -> vector<8x256xf32>
    %c0_45 = arith.constant 0 : index
    %c0_46 = arith.constant 0 : index
    %67 = vector.load %arg4[%c0_45, %c0_46] : memref<256x128xf32, #tpu.memory_space<vmem>>, vector<256x128xf32>
    %cst_47 = arith.constant dense<0.000000e+00> : vector<8x128xf32>
    %68 = tpu.matmul %66, %67, %cst_47 {dimension_numbers = #tpu.dot_dimension_numbers<[1], [0], [0], [1], [0, 0, 1, 1], [], []>} : vector<8x256xf32>, vector<256x128xf32>, vector<8x128xf32> -> vector<8x128xf32>
    %c0_48 = arith.constant 0 : index
    %c0_49 = arith.constant 0 : index
    %69 = vector.load %arg5[%c0_48, %c0_49] : memref<1x128xf32, #tpu.memory_space<vmem>>, vector<1x128xf32>
    %70 = vector.broadcast %69 : vector<1x128xf32> to vector<8x128xf32>
    %71 = arith.addf %68, %70 : vector<8x128xf32>
    %72 = math.tanh %71 : vector<8x128xf32>
    %73 = vector.extract_strided_slice %5 {offsets = [48, 0], sizes = [8, 128], strides = [1, 1]} : vector<64x128xf32> to vector<8x128xf32>
    %c0_50 = arith.constant 0 : index
    %c0_51 = arith.constant 0 : index
    %74 = vector.load %arg2[%c0_50, %c0_51] : memref<128x128xf32, #tpu.memory_space<vmem>>, vector<128x128xf32>
    %cst_52 = arith.constant dense<0.000000e+00> : vector<8x128xf32>
    %75 = tpu.matmul %65, %74, %cst_52 {dimension_numbers = #tpu.dot_dimension_numbers<[1], [0], [0], [1], [0, 0, 1, 1], [], []>} : vector<8x128xf32>, vector<128x128xf32>, vector<8x128xf32> -> vector<8x128xf32>
    %76 = arith.addf %73, %75 : vector<8x128xf32>
    %77 = math.tanh %76 : vector<8x128xf32>
    %78 = tpu.concatenate %65, %72 in 1 : vector<8x128xf32>, vector<8x128xf32> -> vector<8x256xf32>
    %c0_53 = arith.constant 0 : index
    %c0_54 = arith.constant 0 : index
    %79 = vector.load %arg4[%c0_53, %c0_54] : memref<256x128xf32, #tpu.memory_space<vmem>>, vector<256x128xf32>
    %cst_55 = arith.constant dense<0.000000e+00> : vector<8x128xf32>
    %80 = tpu.matmul %78, %79, %cst_55 {dimension_numbers = #tpu.dot_dimension_numbers<[1], [0], [0], [1], [0, 0, 1, 1], [], []>} : vector<8x256xf32>, vector<256x128xf32>, vector<8x128xf32> -> vector<8x128xf32>
    %c0_56 = arith.constant 0 : index
    %c0_57 = arith.constant 0 : index
    %81 = vector.load %arg5[%c0_56, %c0_57] : memref<1x128xf32, #tpu.memory_space<vmem>>, vector<1x128xf32>
    %82 = vector.broadcast %81 : vector<1x128xf32> to vector<8x128xf32>
    %83 = arith.addf %80, %82 : vector<8x128xf32>
    %84 = math.tanh %83 : vector<8x128xf32>
    %85 = vector.extract_strided_slice %5 {offsets = [56, 0], sizes = [8, 128], strides = [1, 1]} : vector<64x128xf32> to vector<8x128xf32>
    %c0_58 = arith.constant 0 : index
    %c0_59 = arith.constant 0 : index
    %86 = vector.load %arg2[%c0_58, %c0_59] : memref<128x128xf32, #tpu.memory_space<vmem>>, vector<128x128xf32>
    %cst_60 = arith.constant dense<0.000000e+00> : vector<8x128xf32>
    %87 = tpu.matmul %77, %86, %cst_60 {dimension_numbers = #tpu.dot_dimension_numbers<[1], [0], [0], [1], [0, 0, 1, 1], [], []>} : vector<8x128xf32>, vector<128x128xf32>, vector<8x128xf32> -> vector<8x128xf32>
    %88 = arith.addf %85, %87 : vector<8x128xf32>
    %89 = math.tanh %88 : vector<8x128xf32>
    %90 = tpu.concatenate %77, %84 in 1 : vector<8x128xf32>, vector<8x128xf32> -> vector<8x256xf32>
    %c0_61 = arith.constant 0 : index
    %c0_62 = arith.constant 0 : index
    %91 = vector.load %arg4[%c0_61, %c0_62] : memref<256x128xf32, #tpu.memory_space<vmem>>, vector<256x128xf32>
    %cst_63 = arith.constant dense<0.000000e+00> : vector<8x128xf32>
    %92 = tpu.matmul %90, %91, %cst_63 {dimension_numbers = #tpu.dot_dimension_numbers<[1], [0], [0], [1], [0, 0, 1, 1], [], []>} : vector<8x256xf32>, vector<256x128xf32>, vector<8x128xf32> -> vector<8x128xf32>
    %c0_64 = arith.constant 0 : index
    %c0_65 = arith.constant 0 : index
    %93 = vector.load %arg5[%c0_64, %c0_65] : memref<1x128xf32, #tpu.memory_space<vmem>>, vector<1x128xf32>
    %94 = vector.broadcast %93 : vector<1x128xf32> to vector<8x128xf32>
    %95 = arith.addf %92, %94 : vector<8x128xf32>
    %96 = math.tanh %95 : vector<8x128xf32>
    %97 = tpu.concatenate %89, %96 in 1 : vector<8x128xf32>, vector<8x128xf32> -> vector<8x256xf32>
    %c0_66 = arith.constant 0 : index
    %c0_67 = arith.constant 0 : index
    %98 = vector.load %arg4[%c0_66, %c0_67] : memref<256x128xf32, #tpu.memory_space<vmem>>, vector<256x128xf32>
    %cst_68 = arith.constant dense<0.000000e+00> : vector<8x128xf32>
    %99 = tpu.matmul %97, %98, %cst_68 {dimension_numbers = #tpu.dot_dimension_numbers<[1], [0], [0], [1], [0, 0, 1, 1], [], []>} : vector<8x256xf32>, vector<256x128xf32>, vector<8x128xf32> -> vector<8x128xf32>
    %c0_69 = arith.constant 0 : index
    %c0_70 = arith.constant 0 : index
    %100 = vector.load %arg5[%c0_69, %c0_70] : memref<1x128xf32, #tpu.memory_space<vmem>>, vector<1x128xf32>
    %101 = vector.broadcast %100 : vector<1x128xf32> to vector<8x128xf32>
    %102 = arith.addf %99, %101 : vector<8x128xf32>
    %103 = math.tanh %102 : vector<8x128xf32>
    %c0_71 = arith.constant 0 : index
    %c0_72 = arith.constant 0 : index
    %104 = vector.load %arg6[%c0_71, %c0_72] : memref<128x128xf32, #tpu.memory_space<vmem>>, vector<128x128xf32>
    %cst_73 = arith.constant dense<0.000000e+00> : vector<8x128xf32>
    %105 = tpu.matmul %103, %104, %cst_73 {dimension_numbers = #tpu.dot_dimension_numbers<[1], [0], [0], [1], [0, 0, 1, 1], [], []>} : vector<8x128xf32>, vector<128x128xf32>, vector<8x128xf32> -> vector<8x128xf32>
    %c0_74 = arith.constant 0 : index
    %c0_75 = arith.constant 0 : index
    %106 = vector.load %arg7[%c0_74, %c0_75] : memref<1x128xf32, #tpu.memory_space<vmem>>, vector<1x128xf32>
    %107 = vector.broadcast %106 : vector<1x128xf32> to vector<8x128xf32>
    %108 = arith.addf %105, %107 : vector<8x128xf32>
    %c0_76 = arith.constant 0 : index
    %c0_77 = arith.constant 0 : index
    %109 = vector.load %arg8[%c0_76, %c0_77] : memref<8x128xf32, #tpu.memory_space<vmem>>, vector<8x128xf32>
    tpu.vector_store %arg8[%c0_76, %c0_77], %108 {strides = array<i32>} : memref<8x128xf32, #tpu.memory_space<vmem>>, vector<8x128xf32>,
    return
  }
}

</mosaic_0001>

<llo_original>
// kernel: rnn_model_forward.1
$region0: #{rnn_model_forward.1}
  #allocation0 [shape = 'u32[]', space=smem, size = 0x4, offset = 0x4, fixed_abs, tag = 'smem constant byte address 0x4 - core index']
  #allocation1 [shape = 'u32[144,128]{1,0:T(1,128)}', space=vmem, size = 0x12000, scoped, tag = 'internal scratch']
  %s0 = inlined_call_operand.vmem [shape: f32[64,128], index: 0, kind: input, shape index: {}]
  %s1 = inlined_call_operand.hbm [shape: f32[128,128], index: 1, kind: input, shape index: {}]
  %s2 = inlined_call_operand.hbm [shape: f32[128,128], index: 2, kind: input, shape index: {}]
  %s3 = inlined_call_operand.vmem [shape: f32[1,128], index: 3, kind: input, shape index: {}]
  %s4 = inlined_call_operand.hbm [shape: f32[256,128], index: 4, kind: input, shape index: {}]
  %s5 = inlined_call_operand.vmem [shape: f32[1,128], index: 5, kind: input, shape index: {}]
  %s6 = inlined_call_operand.hbm [shape: f32[128,128], index: 6, kind: input, shape index: {}]
  %s7 = inlined_call_operand.vmem [shape: f32[1,128], index: 7, kind: input, shape index: {}]
  %s8 = inlined_call_operand.vmem [shape: f32[8,128], index: 8, kind: output, shape index: {}]
  %s9 = sld [smem:[#allocation0]]
  $region58: #{rnn_model_forward.1} parent=0
    _
  %s11 = ssub.s32 1, %s9
  %s12 = scalar_select 0, %s11, %s9
  $region1: #{rnn_model_forward.1} parent=0
    #allocation2 [shape = 'u8[65536]{0}', space=vmem, size = 0x10000, scoped, tag = 'input window, operand 1, single buffered']
    #allocation3 [shape = 's32[1]{0}', space=sflag, size = 0x4, scoped, tag = 'scoped memory for rnn_model_forward.1']
    #allocation4 [shape = 'u8[65536]{0}', space=vmem, size = 0x10000, scoped, tag = 'input window, operand 2, single buffered']
    #allocation5 [shape = 's32[1]{0}', space=sflag, size = 0x4, scoped, tag = 'scoped memory for rnn_model_forward.1']
    #allocation6 [shape = 'u8[131072]{0}', space=vmem, size = 0x20000, scoped, tag = 'input window, operand 4, single buffered']
    #allocation7 [shape = 'u8[65536]{0}', space=vmem, size = 0x10000, scoped, tag = 'input window, operand 6, single buffered']
    #allocation8 [shape = 's32[1]{0}', space=sflag, size = 0x4, scoped, tag = 'scoped memory for rnn_model_forward.1']
    %13 = vsyncpa [#allocation3], 0
    %14 = vsyncpa [#allocation5], 0
    %15 = vsyncpa [#allocation8], 0
    // Predicated region
    $region2: #{rnn_model_forward.1} parent=1 // pred_check
      _
    $region3: #{rnn_model_forward.1} parent=1 // pred_check_branch
      %17 = sbr.rel (0) target = $region5
    $region4: #{rnn_model_forward.1} parent=1 // pred_region
      _
    $region5: #{rnn_model_forward.1} parent=1 // pred_fallthru
      _
    // Predicated region
    $region6: #{rnn_model_forward.1} parent=1 // pred_check
      _
    $region7: #{rnn_model_forward.1} parent=1 // pred_check_branch
      %19 = sbr.rel (0) target = $region9
    $region8: #{rnn_model_forward.1} parent=1 // pred_region
      %s21 = ssub.s32 2048, 2048
      %22 = vsyncadd [#allocation3], %s21
      %s23 = sshll.u32 [#allocation2], 4
      %s24 = int_to_ptr.vmem [resolvable:$true] %s23
      %29 = dma.hbm_to_vmem [thread:$0]  %s1, 2048, %s24, [#allocation3], 128, 128, 8
    $region9: #{rnn_model_forward.1} parent=1 // pred_fallthru
      _
    // Predicated region
    $region10: #{rnn_model_forward.1} parent=1 // pred_check
      _
    $region11: #{rnn_model_forward.1} parent=1 // pred_check_branch
      %31 = sbr.rel (0) target = $region13
    $region12: #{rnn_model_forward.1} parent=1 // pred_region
      %s33 = ssub.s32 2048, 2048
      %34 = vsyncadd [#allocation5], %s33
      %s35 = sshll.u32 [#allocation4], 4
      %s36 = int_to_ptr.vmem [resolvable:$true] %s35
      %41 = dma.hbm_to_vmem [thread:$0]  %s2, 2048, %s36, [#allocation5], 128, 128, 8
    $region13: #{rnn_model_forward.1} parent=1 // pred_fallthru
      _
    // Predicated region
    $region14: #{rnn_model_forward.1} parent=1 // pred_check
      _
    $region15: #{rnn_model_forward.1} parent=1 // pred_check_branch
      %43 = sbr.rel (0) target = $region17
    $region16: #{rnn_model_forward.1} parent=1 // pred_region
      _
    $region17: #{rnn_model_forward.1} parent=1 // pred_fallthru
      _
    // Predicated region
    $region18: #{rnn_model_forward.1} parent=1 // pred_check
      _
    $region19: #{rnn_model_forward.1} parent=1 // pred_check_branch
      %45 = sbr.rel (0) target = $region21
    $region20: #{rnn_model_forward.1} parent=1 // pred_region
      %s47 = ssub.s32 4096, 4096
      %48 = vsyncadd [#allocation5], %s47
      %s49 = sshll.u32 [#allocation6], 4
      %s50 = int_to_ptr.vmem [resolvable:$true] %s49
      %55 = dma.hbm_to_vmem [thread:$0]  %s4, 4096, %s50, [#allocation5], 128, 128, 8
    $region21: #{rnn_model_forward.1} parent=1 // pred_fallthru
      _
    // Predicated region
    $region22: #{rnn_model_forward.1} parent=1 // pred_check
      _
    $region23: #{rnn_model_forward.1} parent=1 // pred_check_branch
      %57 = sbr.rel (0) target = $region25
    $region24: #{rnn_model_forward.1} parent=1 // pred_region
      _
    $region25: #{rnn_model_forward.1} parent=1 // pred_fallthru
      _
    // Predicated region
    $region26: #{rnn_model_forward.1} parent=1 // pred_check
      _
    $region27: #{rnn_model_forward.1} parent=1 // pred_check_branch
      %59 = sbr.rel (0) target = $region29
    $region28: #{rnn_model_forward.1} parent=1 // pred_region
      %s61 = ssub.s32 2048, 2048
      %62 = vsyncadd [#allocation8], %s61
      %s63 = sshll.u32 [#allocation7], 4
      %s64 = int_to_ptr.vmem [resolvable:$true] %s63
      %69 = dma.hbm_to_vmem [thread:$0]  %s6, 2048, %s64, [#allocation8], 128, 128, 8
    $region29: #{rnn_model_forward.1} parent=1 // pred_fallthru
      _
    // Predicated region
    $region30: #{rnn_model_forward.1} parent=1 // pred_check
      _
    $region31: #{rnn_model_forward.1} parent=1 // pred_check_branch
      %71 = sbr.rel (0) target = $region33
    $region32: #{rnn_model_forward.1} parent=1 // pred_region
      _
    $region33: #{rnn_model_forward.1} parent=1 // pred_fallthru
      _
    // Predicated region
    $region34: #{rnn_model_forward.1} parent=1 // pred_check
      _
    $region35: #{rnn_model_forward.1} parent=1 // pred_check_branch
      %73 = sbr.rel (0) target = $region37
    $region36: #{rnn_model_forward.1} parent=1 // pred_region
      %74 = dma.done [#allocation3], 2048
    $region37: #{rnn_model_forward.1} parent=1 // pred_fallthru
      _
    // Predicated region
    $region38: #{rnn_model_forward.1} parent=1 // pred_check
      _
    $region39: #{rnn_model_forward.1} parent=1 // pred_check_branch
      %76 = sbr.rel (0) target = $region41
    $region40: #{rnn_model_forward.1} parent=1 // pred_region
      %77 = dma.done [#allocation5], 2048
    $region41: #{rnn_model_forward.1} parent=1 // pred_fallthru
      _
    // Predicated region
    $region42: #{rnn_model_forward.1} parent=1 // pred_check
      _
    $region43: #{rnn_model_forward.1} parent=1 // pred_check_branch
      %79 = sbr.rel (0) target = $region45
    $region44: #{rnn_model_forward.1} parent=1 // pred_region
      %80 = dma.done [#allocation5], 4096
    $region45: #{rnn_model_forward.1} parent=1 // pred_fallthru
      _
    // Predicated region
    $region46: #{rnn_model_forward.1} parent=1 // pred_check
      _
    $region47: #{rnn_model_forward.1} parent=1 // pred_check_branch
      %82 = sbr.rel (0) target = $region49
    $region48: #{rnn_model_forward.1} parent=1 // pred_region
      %83 = dma.done [#allocation8], 2048
    $region49: #{rnn_model_forward.1} parent=1 // pred_fallthru
      _
    %v84 = vld [vmem:[%s0] sm:$0xff]
    %v85 = vld [vmem:[%s0 + $0x8] sm:$0xff]
    %v86 = vld [vmem:[%s0 + $0x10] sm:$0xff]
    %v87 = vld [vmem:[%s0 + $0x18] sm:$0xff]
    %v88 = vld [vmem:[%s0 + $0x20] sm:$0xff]
    %v89 = vld [vmem:[%s0 + $0x28] sm:$0xff]
    %v90 = vld [vmem:[%s0 + $0x30] sm:$0xff]
    %v91 = vld [vmem:[%s0 + $0x38] sm:$0xff]
    %v92 = vld [vmem:[#allocation2] sm:$0xff]
    %v93 = vld [vmem:[#allocation2 + $0x8] sm:$0xff]
    %v94 = vld [vmem:[#allocation2 + $0x10] sm:$0xff]
    %v95 = vld [vmem:[#allocation2 + $0x18] sm:$0xff]
    %v96 = vld [vmem:[#allocation2 + $0x20] sm:$0xff]
    %v97 = vld [vmem:[#allocation2 + $0x28] sm:$0xff]
    %v98 = vld [vmem:[#allocation2 + $0x30] sm:$0xff]
    %v99 = vld [vmem:[#allocation2 + $0x38] sm:$0xff]
    %v100 = vld [vmem:[#allocation2 + $0x40] sm:$0xff]
    %v101 = vld [vmem:[#allocation2 + $0x48] sm:$0xff]
    %v102 = vld [vmem:[#allocation2 + $0x50] sm:$0xff]
    %v103 = vld [vmem:[#allocation2 + $0x58] sm:$0xff]
    %v104 = vld [vmem:[#allocation2 + $0x60] sm:$0xff]
    %v105 = vld [vmem:[#allocation2 + $0x68] sm:$0xff]
    %v106 = vld [vmem:[#allocation2 + $0x70] sm:$0xff]
    %v107 = vld [vmem:[#allocation2 + $0x78] sm:$0xff]
    %v108 = vld [vmem:[%s3] sm:$0x1]
    %v110 = vlaneseq
    %v111 = vshrl.u32 %v110, 7
    %v112 = vsub.s32 0, %v111
    %v113 = vrot.slane %v108, %v112
    %115 = vmatprep.subr.mxu0 0.0
    %116 = vmatpush1.msra.mxu0 %v107
    %117 = vmatprep.subr.mxu0 0.0
    %118 = vmatpush1.msra.mxu0 %v106
    %119 = vmatprep.subr.mxu0 0.0
    %120 = vmatpush1.msra.mxu0 %v105
    %121 = vmatprep.subr.mxu0 0.0
    %122 = vmatpush1.msra.mxu0 %v104
    %123 = vmatprep.subr.mxu0 0.0
    %124 = vmatpush1.msra.mxu0 %v103
    %125 = vmatprep.subr.mxu0 0.0
    %126 = vmatpush1.msra.mxu0 %v102
    %127 = vmatprep.subr.mxu0 0.0
    %128 = vmatpush1.msra.mxu0 %v101
    %129 = vmatprep.subr.mxu0 0.0
    %130 = vmatpush1.msra.mxu0 %v100
    %131 = vmatprep.subr.mxu0 0.0
    %132 = vmatpush1.msra.mxu0 %v99
    %133 = vmatprep.subr.mxu0 0.0
    %134 = vmatpush1.msra.mxu0 %v98
    %135 = vmatprep.subr.mxu0 0.0
    %136 = vmatpush1.msra.mxu0 %v97
    %137 = vmatprep.subr.mxu0 0.0
    %138 = vmatpush1.msra.mxu0 %v96
    %139 = vmatprep.subr.mxu0 0.0
    %140 = vmatpush1.msra.mxu0 %v95
    %141 = vmatprep.subr.mxu0 0.0
    %142 = vmatpush1.msra.mxu0 %v94
    %143 = vmatprep.subr.mxu0 0.0
    %144 = vmatpush1.msra.mxu0 %v93
    %145 = vmatprep.subr.mxu0 0.0
    %146 = vmatpush1.msra.mxu0 %v92
    %147 = vmatprep.subr.mxu0 0.0
    %148 = vmatpush2.msra.mxu0 0.0
    %149 = vmatprep.subr.mxu0 0.0
    %150 = vmatpush2.msra.mxu0 0.0
    %151 = vmatprep.subr.mxu0 0.0
    %152 = vmatpush2.msra.mxu0 0.0
    %153 = vmatprep.subr.mxu0 0.0
    %154 = vmatpush2.msra.mxu0 0.0
    %155 = vmatprep.subr.mxu0 0.0
    %156 = vmatpush2.msra.mxu0 0.0
    %157 = vmatprep.subr.mxu0 0.0
    %158 = vmatpush2.msra.mxu0 0.0
    %159 = vmatprep.subr.mxu0 0.0
    %160 = vmatpush2.msra.mxu0 0.0
    %161 = vmatprep.subr.mxu0 0.0
    %162 = vmatpush2.msra.mxu0 0.0
    %163 = vmatprep.subr.mxu0 0.0
    %164 = vmatpush2.msra.mxu0 0.0
    %165 = vmatprep.subr.mxu0 0.0
    %166 = vmatpush2.msra.mxu0 0.0
    %167 = vmatprep.subr.mxu0 0.0
    %168 = vmatpush2.msra.mxu0 0.0
    %169 = vmatprep.subr.mxu0 0.0
    %170 = vmatpush2.msra.mxu0 0.0
    %171 = vmatprep.subr.mxu0 0.0
    %172 = vmatpush2.msra.mxu0 0.0
    %173 = vmatprep.subr.mxu0 0.0
    %174 = vmatpush2.msra.mxu0 0.0
    %175 = vmatprep.subr.mxu0 0.0
    %176 = vmatpush2.msra.mxu0 0.0
    %177 = vmatprep.subr.mxu0 0.0
    %178 = vmatpush2.msra.mxu0 0.0
    %179 = vmatprep.mubr.f32.mxu0 0.0
    %180 = vmatmul.mubr.f32.gmra.mxu0 %v84
    %v181 = vpop.f32.mrf.mxu0
    %v182 = vadd.f32 %v113, %v181
    %v183 = vpop.f32.mrf.mxu0
    %184 = vmatprep.mubr.f32.mxu0 0.0
    %185 = vmatmul.mubr.f32.gmra.mxu0 %v85
    %v186 = vpop.f32.mrf.mxu0
    %v187 = vadd.f32 %v113, %v186
    %v188 = vpop.f32.mrf.mxu0
    %189 = vmatprep.mubr.f32.mxu0 0.0
    %190 = vmatmul.mubr.f32.gmra.mxu0 %v86
    %v191 = vpop.f32.mrf.mxu0
    %v192 = vadd.f32 %v113, %v191
    %v193 = vpop.f32.mrf.mxu0
    %194 = vmatprep.mubr.f32.mxu0 0.0
    %195 = vmatmul.mubr.f32.gmra.mxu0 %v87
    %v196 = vpop.f32.mrf.mxu0
    %v197 = vadd.f32 %v113, %v196
    %v198 = vpop.f32.mrf.mxu0
    %199 = vmatprep.mubr.f32.mxu0 0.0
    %200 = vmatmul.mubr.f32.gmra.mxu0 %v88
    %v201 = vpop.f32.mrf.mxu0
    %v202 = vadd.f32 %v113, %v201
    %v203 = vpop.f32.mrf.mxu0
    %204 = vmatprep.mubr.f32.mxu0 0.0
    %205 = vmatmul.mubr.f32.gmra.mxu0 %v89
    %v206 = vpop.f32.mrf.mxu0
    %v207 = vadd.f32 %v113, %v206
    %v208 = vpop.f32.mrf.mxu0
    %209 = vmatprep.mubr.f32.mxu0 0.0
    %210 = vmatmul.mubr.f32.gmra.mxu0 %v90
    %v211 = vpop.f32.mrf.mxu0
    %v212 = vadd.f32 %v113, %v211
    %v213 = vpop.f32.mrf.mxu0
    %214 = vmatprep.mubr.f32.mxu0 0.0
    %215 = vmatmul.mubr.f32.gmra.mxu0 %v91
    %v216 = vpop.f32.mrf.mxu0
    %v217 = vadd.f32 %v113, %v216
    %v218 = vpop.f32.mrf.mxu0
    %219 = vdwg.mxu0
    %v220 = vld [vmem:[#allocation4] sm:$0xff]
    %v221 = vld [vmem:[#allocation4 + $0x8] sm:$0xff]
    %v222 = vld [vmem:[#allocation4 + $0x10] sm:$0xff]
    %v223 = vld [vmem:[#allocation4 + $0x18] sm:$0xff]
    %v224 = vld [vmem:[#allocation4 + $0x20] sm:$0xff]
    %v225 = vld [vmem:[#allocation4 + $0x28] sm:$0xff]
    %v226 = vld [vmem:[#allocation4 + $0x30] sm:$0xff]
    %v227 = vld [vmem:[#allocation4 + $0x38] sm:$0xff]
    %v228 = vld [vmem:[#allocation4 + $0x40] sm:$0xff]
    %v229 = vld [vmem:[#allocation4 + $0x48] sm:$0xff]
    %v230 = vld [vmem:[#allocation4 + $0x50] sm:$0xff]
    %v231 = vld [vmem:[#allocation4 + $0x58] sm:$0xff]
    %v232 = vld [vmem:[#allocation4 + $0x60] sm:$0xff]
    %v233 = vld [vmem:[#allocation4 + $0x68] sm:$0xff]
    %v234 = vld [vmem:[#allocation4 + $0x70] sm:$0xff]
    %v235 = vld [vmem:[#allocation4 + $0x78] sm:$0xff]
    %236 = vmatprep.subr.mxu0 0.0
    %237 = vmatpush1.msra.mxu0 %v235
    %238 = vmatprep.subr.mxu0 0.0
    %239 = vmatpush1.msra.mxu0 %v234
    %240 = vmatprep.subr.mxu0 0.0
    %241 = vmatpush1.msra.mxu0 %v233
    %242 = vmatprep.subr.mxu0 0.0
    %243 = vmatpush1.msra.mxu0 %v232
    %244 = vmatprep.subr.mxu0 0.0
    %245 = vmatpush1.msra.mxu0 %v231
    %246 = vmatprep.subr.mxu0 0.0
    %247 = vmatpush1.msra.mxu0 %v230
    %248 = vmatprep.subr.mxu0 0.0
    %249 = vmatpush1.msra.mxu0 %v229
    %250 = vmatprep.subr.mxu0 0.0
    %251 = vmatpush1.msra.mxu0 %v228
    %252 = vmatprep.subr.mxu0 0.0
    %253 = vmatpush1.msra.mxu0 %v227
    %254 = vmatprep.subr.mxu0 0.0
    %255 = vmatpush1.msra.mxu0 %v226
    %256 = vmatprep.subr.mxu0 0.0
    %257 = vmatpush1.msra.mxu0 %v225
    %258 = vmatprep.subr.mxu0 0.0
    %259 = vmatpush1.msra.mxu0 %v224
    %260 = vmatprep.subr.mxu0 0.0
    %261 = vmatpush1.msra.mxu0 %v223
    %262 = vmatprep.subr.mxu0 0.0
    %263 = vmatpush1.msra.mxu0 %v222
    %264 = vmatprep.subr.mxu0 0.0
    %265 = vmatpush1.msra.mxu0 %v221
    %266 = vmatprep.subr.mxu0 0.0
    %267 = vmatpush1.msra.mxu0 %v220
    %268 = vmatprep.subr.mxu0 0.0
    %269 = vmatpush2.msra.mxu0 0.0
    %270 = vmatprep.subr.mxu0 0.0
    %271 = vmatpush2.msra.mxu0 0.0
    %272 = vmatprep.subr.mxu0 0.0
    %273 = vmatpush2.msra.mxu0 0.0
    %274 = vmatprep.subr.mxu0 0.0
    %275 = vmatpush2.msra.mxu0 0.0
    %276 = vmatprep.subr.mxu0 0.0
    %277 = vmatpush2.msra.mxu0 0.0
    %278 = vmatprep.subr.mxu0 0.0
    %279 = vmatpush2.msra.mxu0 0.0
    %280 = vmatprep.subr.mxu0 0.0
    %281 = vmatpush2.msra.mxu0 0.0
    %282 = vmatprep.subr.mxu0 0.0
    %283 = vmatpush2.msra.mxu0 0.0
    %284 = vmatprep.subr.mxu0 0.0
    %285 = vmatpush2.msra.mxu0 0.0
    %286 = vmatprep.subr.mxu0 0.0
    %287 = vmatpush2.msra.mxu0 0.0
    %288 = vmatprep.subr.mxu0 0.0
    %289 = vmatpush2.msra.mxu0 0.0
    %290 = vmatprep.subr.mxu0 0.0
    %291 = vmatpush2.msra.mxu0 0.0
    %292 = vmatprep.subr.mxu0 0.0
    %293 = vmatpush2.msra.mxu0 0.0
    %294 = vmatprep.subr.mxu0 0.0
    %295 = vmatpush2.msra.mxu0 0.0
    %296 = vmatprep.subr.mxu0 0.0
    %297 = vmatpush2.msra.mxu0 0.0
    %298 = vmatprep.subr.mxu0 0.0
    %299 = vmatpush2.msra.mxu0 0.0
    %300 = vmatprep.mubr.f32.mxu0 0.0
    %301 = vmatmul.mubr.f32.gmra.mxu0 1.0
    %v302 = vpop.f32.mrf.mxu0
    %v303 = vadd.f32 0.0, %v302
    %v304 = vpop.f32.mrf.mxu0
    %305 = vdwg.mxu0
    %v306 = vadd.f32 %v182, %v303
    %v307 = vtanh.pop %v306
    %308 = vmatprep.subr.mxu0 0.0
    %309 = vmatpush1.msra.mxu0 %v235
    %310 = vmatprep.subr.mxu0 0.0
    %311 = vmatpush1.msra.mxu0 %v234
    %312 = vmatprep.subr.mxu0 0.0
    %313 = vmatpush1.msra.mxu0 %v233
    %314 = vmatprep.subr.mxu0 0.0
    %315 = vmatpush1.msra.mxu0 %v232
    %316 = vmatprep.subr.mxu0 0.0
    %317 = vmatpush1.msra.mxu0 %v231
    %318 = vmatprep.subr.mxu0 0.0
    %319 = vmatpush1.msra.mxu0 %v230
    %320 = vmatprep.subr.mxu0 0.0
    %321 = vmatpush1.msra.mxu0 %v229
    %322 = vmatprep.subr.mxu0 0.0
    %323 = vmatpush1.msra.mxu0 %v228
    %324 = vmatprep.subr.mxu0 0.0
    %325 = vmatpush1.msra.mxu0 %v227
    %326 = vmatprep.subr.mxu0 0.0
    %327 = vmatpush1.msra.mxu0 %v226
    %328 = vmatprep.subr.mxu0 0.0
    %329 = vmatpush1.msra.mxu0 %v225
    %330 = vmatprep.subr.mxu0 0.0
    %331 = vmatpush1.msra.mxu0 %v224
    %332 = vmatprep.subr.mxu0 0.0
    %333 = vmatpush1.msra.mxu0 %v223
    %334 = vmatprep.subr.mxu0 0.0
    %335 = vmatpush1.msra.mxu0 %v222
    %336 = vmatprep.subr.mxu0 0.0
    %337 = vmatpush1.msra.mxu0 %v221
    %338 = vmatprep.subr.mxu0 0.0
    %339 = vmatpush1.msra.mxu0 %v220
    %340 = vmatprep.subr.mxu0 0.0
    %341 = vmatpush2.msra.mxu0 0.0
    %342 = vmatprep.subr.mxu0 0.0
    %343 = vmatpush2.msra.mxu0 0.0
    %344 = vmatprep.subr.mxu0 0.0
    %345 = vmatpush2.msra.mxu0 0.0
    %346 = vmatprep.subr.mxu0 0.0
    %347 = vmatpush2.msra.mxu0 0.0
    %348 = vmatprep.subr.mxu0 0.0
    %349 = vmatpush2.msra.mxu0 0.0
    %350 = vmatprep.subr.mxu0 0.0
    %351 = vmatpush2.msra.mxu0 0.0
    %352 = vmatprep.subr.mxu0 0.0
    %353 = vmatpush2.msra.mxu0 0.0
    %354 = vmatprep.subr.mxu0 0.0
    %355 = vmatpush2.msra.mxu0 0.0
    %356 = vmatprep.subr.mxu0 0.0
    %357 = vmatpush2.msra.mxu0 0.0
    %358 = vmatprep.subr.mxu0 0.0
    %359 = vmatpush2.msra.mxu0 0.0
    %360 = vmatprep.subr.mxu0 0.0
    %361 = vmatpush2.msra.mxu0 0.0
    %362 = vmatprep.subr.mxu0 0.0
    %363 = vmatpush2.msra.mxu0 0.0
    %364 = vmatprep.subr.mxu0 0.0
    %365 = vmatpush2.msra.mxu0 0.0
    %366 = vmatprep.subr.mxu0 0.0
    %367 = vmatpush2.msra.mxu0 0.0
    %368 = vmatprep.subr.mxu0 0.0
    %369 = vmatpush2.msra.mxu0 0.0
    %370 = vmatprep.subr.mxu0 0.0
    %371 = vmatpush2.msra.mxu0 0.0
    %372 = vmatprep.mubr.f32.mxu0 0.0
    %373 = vmatmul.mubr.f32.gmra.mxu0 %v307
    %v374 = vpop.f32.mrf.mxu0
    %v375 = vadd.f32 0.0, %v374
    %v376 = vpop.f32.mrf.mxu0
    %377 = vdwg.mxu0
    %v378 = vadd.f32 %v187, %v375
    %v379 = vtanh.pop %v378
    %v380 = vld [vmem:[#allocation6] sm:$0xff]
    %v381 = vld [vmem:[#allocation6 + $0x8] sm:$0xff]
    %v382 = vld [vmem:[#allocation6 + $0x10] sm:$0xff]
    %v383 = vld [vmem:[#allocation6 + $0x18] sm:$0xff]
    %v384 = vld [vmem:[#allocation6 + $0x20] sm:$0xff]
    %v385 = vld [vmem:[#allocation6 + $0x28] sm:$0xff]
    %v386 = vld [vmem:[#allocation6 + $0x30] sm:$0xff]
    %v387 = vld [vmem:[#allocation6 + $0x38] sm:$0xff]
    %v388 = vld [vmem:[#allocation6 + $0x40] sm:$0xff]
    %v389 = vld [vmem:[#allocation6 + $0x48] sm:$0xff]
    %v390 = vld [vmem:[#allocation6 + $0x50] sm:$0xff]
    %v391 = vld [vmem:[#allocation6 + $0x58] sm:$0xff]
    %v392 = vld [vmem:[#allocation6 + $0x60] sm:$0xff]
    %v393 = vld [vmem:[#allocation6 + $0x68] sm:$0xff]
    %v394 = vld [vmem:[#allocation6 + $0x70] sm:$0xff]
    %v395 = vld [vmem:[#allocation6 + $0x78] sm:$0xff]
    %v396 = vld [vmem:[#allocation6 + $0x80] sm:$0xff]
    %v397 = vld [vmem:[#allocation6 + $0x88] sm:$0xff]
    %v398 = vld [vmem:[#allocation6 + $0x90] sm:$0xff]
    %v399 = vld [vmem:[#allocation6 + $0x98] sm:$0xff]
    %v400 = vld [vmem:[#allocation6 + $0xa0] sm:$0xff]
    %v401 = vld [vmem:[#allocation6 + $0xa8] sm:$0xff]
    %v402 = vld [vmem:[#allocation6 + $0xb0] sm:$0xff]
    %v403 = vld [vmem:[#allocation6 + $0xb8] sm:$0xff]
    %v404 = vld [vmem:[#allocation6 + $0xc0] sm:$0xff]
    %v405 = vld [vmem:[#allocation6 + $0xc8] sm:$0xff]
    %v406 = vld [vmem:[#allocation6 + $0xd0] sm:$0xff]
    %v407 = vld [vmem:[#allocation6 + $0xd8] sm:$0xff]
    %v408 = vld [vmem:[#allocation6 + $0xe0] sm:$0xff]
    %v409 = vld [vmem:[#allocation6 + $0xe8] sm:$0xff]
    %v410 = vld [vmem:[#allocation6 + $0xf0] sm:$0xff]
    %v411 = vld [vmem:[#allocation6 + $0xf8] sm:$0xff]
    %v412 = vld [vmem:[%s5] sm:$0x1]
    %v414 = vlaneseq
    %v415 = vshrl.u32 %v414, 7
    %v416 = vsub.s32 0, %v415
    %v417 = vrot.slane %v412, %v416
    %419 = vmatprep.subr.mxu0 0.0
    %420 = vmatpush1.msra.mxu0 %v395
    %421 = vmatprep.subr.mxu0 0.0
    %422 = vmatpush1.msra.mxu0 %v394
    %423 = vmatprep.subr.mxu0 0.0
    %424 = vmatpush1.msra.mxu0 %v393
    %425 = vmatprep.subr.mxu0 0.0
    %426 = vmatpush1.msra.mxu0 %v392
    %427 = vmatprep.subr.mxu0 0.0
    %428 = vmatpush1.msra.mxu0 %v391
    %429 = vmatprep.subr.mxu0 0.0
    %430 = vmatpush1.msra.mxu0 %v390
    %431 = vmatprep.subr.mxu0 0.0
    %432 = vmatpush1.msra.mxu0 %v389
    %433 = vmatprep.subr.mxu0 0.0
    %434 = vmatpush1.msra.mxu0 %v388
    %435 = vmatprep.subr.mxu0 0.0
    %436 = vmatpush1.msra.mxu0 %v387
    %437 = vmatprep.subr.mxu0 0.0
    %438 = vmatpush1.msra.mxu0 %v386
    %439 = vmatprep.subr.mxu0 0.0
    %440 = vmatpush1.msra.mxu0 %v385
    %441 = vmatprep.subr.mxu0 0.0
    %442 = vmatpush1.msra.mxu0 %v384
    %443 = vmatprep.subr.mxu0 0.0
    %444 = vmatpush1.msra.mxu0 %v383
    %445 = vmatprep.subr.mxu0 0.0
    %446 = vmatpush1.msra.mxu0 %v382
    %447 = vmatprep.subr.mxu0 0.0
    %448 = vmatpush1.msra.mxu0 %v381
    %449 = vmatprep.subr.mxu0 0.0
    %450 = vmatpush1.msra.mxu0 %v380
    %451 = vmatprep.subr.mxu0 0.0
    %452 = vmatpush2.msra.mxu0 %v411
    %453 = vmatprep.subr.mxu0 0.0
    %454 = vmatpush2.msra.mxu0 %v410
    %455 = vmatprep.subr.mxu0 0.0
    %456 = vmatpush2.msra.mxu0 %v409
    %457 = vmatprep.subr.mxu0 0.0
    %458 = vmatpush2.msra.mxu0 %v408
    %459 = vmatprep.subr.mxu0 0.0
    %460 = vmatpush2.msra.mxu0 %v407
    %461 = vmatprep.subr.mxu0 0.0
    %462 = vmatpush2.msra.mxu0 %v406
    %463 = vmatprep.subr.mxu0 0.0
    %464 = vmatpush2.msra.mxu0 %v405
    %465 = vmatprep.subr.mxu0 0.0
    %466 = vmatpush2.msra.mxu0 %v404
    %467 = vmatprep.subr.mxu0 0.0
    %468 = vmatpush2.msra.mxu0 %v403
    %469 = vmatprep.subr.mxu0 0.0
    %470 = vmatpush2.msra.mxu0 %v402
    %471 = vmatprep.subr.mxu0 0.0
    %472 = vmatpush2.msra.mxu0 %v401
    %473 = vmatprep.subr.mxu0 0.0
    %474 = vmatpush2.msra.mxu0 %v400
    %475 = vmatprep.subr.mxu0 0.0
    %476 = vmatpush2.msra.mxu0 %v399
    %477 = vmatprep.subr.mxu0 0.0
    %478 = vmatpush2.msra.mxu0 %v398
    %479 = vmatprep.subr.mxu0 0.0
    %480 = vmatpush2.msra.mxu0 %v397
    %481 = vmatprep.subr.mxu0 0.0
    %482 = vmatpush2.msra.mxu0 %v396
    %483 = vmatprep.mubr.f32.mxu0 1.0
    %484 = vmatmul.mubr.f32.gmra.mxu0 %v307
    %v485 = vpop.f32.mrf.mxu0
    %v486 = vadd.f32 %v417, %v485
    %v487 = vpop.f32.mrf.mxu0
    %488 = vdwg.mxu0
    %v489 = vtanh.pop %v486
    %490 = vmatprep.subr.mxu0 0.0
    %491 = vmatpush1.msra.mxu0 %v235
    %492 = vmatprep.subr.mxu0 0.0
    %493 = vmatpush1.msra.mxu0 %v234
    %494 = vmatprep.subr.mxu0 0.0
    %495 = vmatpush1.msra.mxu0 %v233
    %496 = vmatprep.subr.mxu0 0.0
    %497 = vmatpush1.msra.mxu0 %v232
    %498 = vmatprep.subr.mxu0 0.0
    %499 = vmatpush1.msra.mxu0 %v231
    %500 = vmatprep.subr.mxu0 0.0
    %501 = vmatpush1.msra.mxu0 %v230
    %502 = vmatprep.subr.mxu0 0.0
    %503 = vmatpush1.msra.mxu0 %v229
    %504 = vmatprep.subr.mxu0 0.0
    %505 = vmatpush1.msra.mxu0 %v228
    %506 = vmatprep.subr.mxu0 0.0
    %507 = vmatpush1.msra.mxu0 %v227
    %508 = vmatprep.subr.mxu0 0.0
    %509 = vmatpush1.msra.mxu0 %v226
    %510 = vmatprep.subr.mxu0 0.0
    %511 = vmatpush1.msra.mxu0 %v225
    %512 = vmatprep.subr.mxu0 0.0
    %513 = vmatpush1.msra.mxu0 %v224
    %514 = vmatprep.subr.mxu0 0.0
    %515 = vmatpush1.msra.mxu0 %v223
    %516 = vmatprep.subr.mxu0 0.0
    %517 = vmatpush1.msra.mxu0 %v222
    %518 = vmatprep.subr.mxu0 0.0
    %519 = vmatpush1.msra.mxu0 %v221
    %520 = vmatprep.subr.mxu0 0.0
    %521 = vmatpush1.msra.mxu0 %v220
    %522 = vmatprep.subr.mxu0 0.0
    %523 = vmatpush2.msra.mxu0 0.0
    %524 = vmatprep.subr.mxu0 0.0
    %525 = vmatpush2.msra.mxu0 0.0
    %526 = vmatprep.subr.mxu0 0.0
    %527 = vmatpush2.msra.mxu0 0.0
    %528 = vmatprep.subr.mxu0 0.0
    %529 = vmatpush2.msra.mxu0 0.0
    %530 = vmatprep.subr.mxu0 0.0
    %531 = vmatpush2.msra.mxu0 0.0
    %532 = vmatprep.subr.mxu0 0.0
    %533 = vmatpush2.msra.mxu0 0.0
    %534 = vmatprep.subr.mxu0 0.0
    %535 = vmatpush2.msra.mxu0 0.0
    %536 = vmatprep.subr.mxu0 0.0
    %537 = vmatpush2.msra.mxu0 0.0
    %538 = vmatprep.subr.mxu0 0.0
    %539 = vmatpush2.msra.mxu0 0.0
    %540 = vmatprep.subr.mxu0 0.0
    %541 = vmatpush2.msra.mxu0 0.0
    %542 = vmatprep.subr.mxu0 0.0
    %543 = vmatpush2.msra.mxu0 0.0
    %544 = vmatprep.subr.mxu0 0.0
    %545 = vmatpush2.msra.mxu0 0.0
    %546 = vmatprep.subr.mxu0 0.0
    %547 = vmatpush2.msra.mxu0 0.0
    %548 = vmatprep.subr.mxu0 0.0
    %549 = vmatpush2.msra.mxu0 0.0
    %550 = vmatprep.subr.mxu0 0.0
    %551 = vmatpush2.msra.mxu0 0.0
    %552 = vmatprep.subr.mxu0 0.0
    %553 = vmatpush2.msra.mxu0 0.0
    %554 = vmatprep.mubr.f32.mxu0 0.0
    %555 = vmatmul.mubr.f32.gmra.mxu0 %v379
    %v556 = vpop.f32.mrf.mxu0
    %v557 = vadd.f32 0.0, %v556
    %v558 = vpop.f32.mrf.mxu0
    %559 = vdwg.mxu0
    %v560 = vadd.f32 %v192, %v557
    %v561 = vtanh.pop %v560
    %562 = vmatprep.subr.mxu0 0.0
    %563 = vmatpush1.msra.mxu0 %v395
    %564 = vmatprep.subr.mxu0 0.0
    %565 = vmatpush1.msra.mxu0 %v394
    %566 = vmatprep.subr.mxu0 0.0
    %567 = vmatpush1.msra.mxu0 %v393
    %568 = vmatprep.subr.mxu0 0.0
    %569 = vmatpush1.msra.mxu0 %v392
    %570 = vmatprep.subr.mxu0 0.0
    %571 = vmatpush1.msra.mxu0 %v391
    %572 = vmatprep.subr.mxu0 0.0
    %573 = vmatpush1.msra.mxu0 %v390
    %574 = vmatprep.subr.mxu0 0.0
    %575 = vmatpush1.msra.mxu0 %v389
    %576 = vmatprep.subr.mxu0 0.0
    %577 = vmatpush1.msra.mxu0 %v388
    %578 = vmatprep.subr.mxu0 0.0
    %579 = vmatpush1.msra.mxu0 %v387
    %580 = vmatprep.subr.mxu0 0.0
    %581 = vmatpush1.msra.mxu0 %v386
    %582 = vmatprep.subr.mxu0 0.0
    %583 = vmatpush1.msra.mxu0 %v385
    %584 = vmatprep.subr.mxu0 0.0
    %585 = vmatpush1.msra.mxu0 %v384
    %586 = vmatprep.subr.mxu0 0.0
    %587 = vmatpush1.msra.mxu0 %v383
    %588 = vmatprep.subr.mxu0 0.0
    %589 = vmatpush1.msra.mxu0 %v382
    %590 = vmatprep.subr.mxu0 0.0
    %591 = vmatpush1.msra.mxu0 %v381
    %592 = vmatprep.subr.mxu0 0.0
    %593 = vmatpush1.msra.mxu0 %v380
    %594 = vmatprep.subr.mxu0 0.0
    %595 = vmatpush2.msra.mxu0 %v411
    %596 = vmatprep.subr.mxu0 0.0
    %597 = vmatpush2.msra.mxu0 %v410
    %598 = vmatprep.subr.mxu0 0.0
    %599 = vmatpush2.msra.mxu0 %v409
    %600 = vmatprep.subr.mxu0 0.0
    %601 = vmatpush2.msra.mxu0 %v408
    %602 = vmatprep.subr.mxu0 0.0
    %603 = vmatpush2.msra.mxu0 %v407
    %604 = vmatprep.subr.mxu0 0.0
    %605 = vmatpush2.msra.mxu0 %v406
    %606 = vmatprep.subr.mxu0 0.0
    %607 = vmatpush2.msra.mxu0 %v405
    %608 = vmatprep.subr.mxu0 0.0
    %609 = vmatpush2.msra.mxu0 %v404
    %610 = vmatprep.subr.mxu0 0.0
    %611 = vmatpush2.msra.mxu0 %v403
    %612 = vmatprep.subr.mxu0 0.0
    %613 = vmatpush2.msra.mxu0 %v402
    %614 = vmatprep.subr.mxu0 0.0
    %615 = vmatpush2.msra.mxu0 %v401
    %616 = vmatprep.subr.mxu0 0.0
    %617 = vmatpush2.msra.mxu0 %v400
    %618 = vmatprep.subr.mxu0 0.0
    %619 = vmatpush2.msra.mxu0 %v399
    %620 = vmatprep.subr.mxu0 0.0
    %621 = vmatpush2.msra.mxu0 %v398
    %622 = vmatprep.subr.mxu0 0.0
    %623 = vmatpush2.msra.mxu0 %v397
    %624 = vmatprep.subr.mxu0 0.0
    %625 = vmatpush2.msra.mxu0 %v396
    %626 = vmatprep.mubr.f32.mxu0 %v489
    %627 = vmatmul.mubr.f32.gmra.mxu0 %v379
    %v628 = vpop.f32.mrf.mxu0
    %v629 = vadd.f32 %v417, %v628
    %v630 = vpop.f32.mrf.mxu0
    %631 = vdwg.mxu0
    %v632 = vtanh.pop %v629
    %633 = vmatprep.subr.mxu0 0.0
    %634 = vmatpush1.msra.mxu0 %v235
    %635 = vmatprep.subr.mxu0 0.0
    %636 = vmatpush1.msra.mxu0 %v234
    %637 = vmatprep.subr.mxu0 0.0
    %638 = vmatpush1.msra.mxu0 %v233
    %639 = vmatprep.subr.mxu0 0.0
    %640 = vmatpush1.msra.mxu0 %v232
    %641 = vmatprep.subr.mxu0 0.0
    %642 = vmatpush1.msra.mxu0 %v231
    %643 = vmatprep.subr.mxu0 0.0
    %644 = vmatpush1.msra.mxu0 %v230
    %645 = vmatprep.subr.mxu0 0.0
    %646 = vmatpush1.msra.mxu0 %v229
    %647 = vmatprep.subr.mxu0 0.0
    %648 = vmatpush1.msra.mxu0 %v228
    %649 = vmatprep.subr.mxu0 0.0
    %650 = vmatpush1.msra.mxu0 %v227
    %651 = vmatprep.subr.mxu0 0.0
    %652 = vmatpush1.msra.mxu0 %v226
    %653 = vmatprep.subr.mxu0 0.0
    %654 = vmatpush1.msra.mxu0 %v225
    %655 = vmatprep.subr.mxu0 0.0
    %656 = vmatpush1.msra.mxu0 %v224
    %657 = vmatprep.subr.mxu0 0.0
    %658 = vmatpush1.msra.mxu0 %v223
    %659 = vmatprep.subr.mxu0 0.0
    %660 = vmatpush1.msra.mxu0 %v222
    %661 = vmatprep.subr.mxu0 0.0
    %662 = vmatpush1.msra.mxu0 %v221
    %663 = vmatprep.subr.mxu0 0.0
    %664 = vmatpush1.msra.mxu0 %v220
    %665 = vmatprep.subr.mxu0 0.0
    %666 = vmatpush2.msra.mxu0 0.0
    %667 = vmatprep.subr.mxu0 0.0
    %668 = vmatpush2.msra.mxu0 0.0
    %669 = vmatprep.subr.mxu0 0.0
    %670 = vmatpush2.msra.mxu0 0.0
    %671 = vmatprep.subr.mxu0 0.0
    %672 = vmatpush2.msra.mxu0 0.0
    %673 = vmatprep.subr.mxu0 0.0
    %674 = vmatpush2.msra.mxu0 0.0
    %675 = vmatprep.subr.mxu0 0.0
    %676 = vmatpush2.msra.mxu0 0.0
    %677 = vmatprep.subr.mxu0 0.0
    %678 = vmatpush2.msra.mxu0 0.0
    %679 = vmatprep.subr.mxu0 0.0
    %680 = vmatpush2.msra.mxu0 0.0
    %681 = vmatprep.subr.mxu0 0.0
    %682 = vmatpush2.msra.mxu0 0.0
    %683 = vmatprep.subr.mxu0 0.0
    %684 = vmatpush2.msra.mxu0 0.0
    %685 = vmatprep.subr.mxu0 0.0
    %686 = vmatpush2.msra.mxu0 0.0
    %687 = vmatprep.subr.mxu0 0.0
    %688 = vmatpush2.msra.mxu0 0.0
    %689 = vmatprep.subr.mxu0 0.0
    %690 = vmatpush2.msra.mxu0 0.0
    %691 = vmatprep.subr.mxu0 0.0
    %692 = vmatpush2.msra.mxu0 0.0
    %693 = vmatprep.subr.mxu0 0.0
    %694 = vmatpush2.msra.mxu0 0.0
    %695 = vmatprep.subr.mxu0 0.0
    %696 = vmatpush2.msra.mxu0 0.0
    %697 = vmatprep.mubr.f32.mxu0 0.0
    %698 = vmatmul.mubr.f32.gmra.mxu0 %v561
    %v699 = vpop.f32.mrf.mxu0
    %v700 = vadd.f32 0.0, %v699
    %v701 = vpop.f32.mrf.mxu0
    %702 = vdwg.mxu0
    %v703 = vadd.f32 %v197, %v700
    %v704 = vtanh.pop %v703
    %705 = vmatprep.subr.mxu0 0.0
    %706 = vmatpush1.msra.mxu0 %v395
    %707 = vmatprep.subr.mxu0 0.0
    %708 = vmatpush1.msra.mxu0 %v394
    %709 = vmatprep.subr.mxu0 0.0
    %710 = vmatpush1.msra.mxu0 %v393
    %711 = vmatprep.subr.mxu0 0.0
    %712 = vmatpush1.msra.mxu0 %v392
    %713 = vmatprep.subr.mxu0 0.0
    %714 = vmatpush1.msra.mxu0 %v391
    %715 = vmatprep.subr.mxu0 0.0
    %716 = vmatpush1.msra.mxu0 %v390
    %717 = vmatprep.subr.mxu0 0.0
    %718 = vmatpush1.msra.mxu0 %v389
    %719 = vmatprep.subr.mxu0 0.0
    %720 = vmatpush1.msra.mxu0 %v388
    %721 = vmatprep.subr.mxu0 0.0
    %722 = vmatpush1.msra.mxu0 %v387
    %723 = vmatprep.subr.mxu0 0.0
    %724 = vmatpush1.msra.mxu0 %v386
    %725 = vmatprep.subr.mxu0 0.0
    %726 = vmatpush1.msra.mxu0 %v385
    %727 = vmatprep.subr.mxu0 0.0
    %728 = vmatpush1.msra.mxu0 %v384
    %729 = vmatprep.subr.mxu0 0.0
    %730 = vmatpush1.msra.mxu0 %v383
    %731 = vmatprep.subr.mxu0 0.0
    %732 = vmatpush1.msra.mxu0 %v382
    %733 = vmatprep.subr.mxu0 0.0
    %734 = vmatpush1.msra.mxu0 %v381
    %735 = vmatprep.subr.mxu0 0.0
    %736 = vmatpush1.msra.mxu0 %v380
    %737 = vmatprep.subr.mxu0 0.0
    %738 = vmatpush2.msra.mxu0 %v411
    %739 = vmatprep.subr.mxu0 0.0
    %740 = vmatpush2.msra.mxu0 %v410
    %741 = vmatprep.subr.mxu0 0.0
    %742 = vmatpush2.msra.mxu0 %v409
    %743 = vmatprep.subr.mxu0 0.0
    %744 = vmatpush2.msra.mxu0 %v408
    %745 = vmatprep.subr.mxu0 0.0
    %746 = vmatpush2.msra.mxu0 %v407
    %747 = vmatprep.subr.mxu0 0.0
    %748 = vmatpush2.msra.mxu0 %v406
    %749 = vmatprep.subr.mxu0 0.0
    %750 = vmatpush2.msra.mxu0 %v405
    %751 = vmatprep.subr.mxu0 0.0
    %752 = vmatpush2.msra.mxu0 %v404
    %753 = vmatprep.subr.mxu0 0.0
    %754 = vmatpush2.msra.mxu0 %v403
    %755 = vmatprep.subr.mxu0 0.0
    %756 = vmatpush2.msra.mxu0 %v402
    %757 = vmatprep.subr.mxu0 0.0
    %758 = vmatpush2.msra.mxu0 %v401
    %759 = vmatprep.subr.mxu0 0.0
    %760 = vmatpush2.msra.mxu0 %v400
    %761 = vmatprep.subr.mxu0 0.0
    %762 = vmatpush2.msra.mxu0 %v399
    %763 = vmatprep.subr.mxu0 0.0
    %764 = vmatpush2.msra.mxu0 %v398
    %765 = vmatprep.subr.mxu0 0.0
    %766 = vmatpush2.msra.mxu0 %v397
    %767 = vmatprep.subr.mxu0 0.0
    %768 = vmatpush2.msra.mxu0 %v396
    %769 = vmatprep.mubr.f32.mxu0 %v632
    %770 = vmatmul.mubr.f32.gmra.mxu0 %v561
    %v771 = vpop.f32.mrf.mxu0
    %v772 = vadd.f32 %v417, %v771
    %v773 = vpop.f32.mrf.mxu0
    %774 = vdwg.mxu0
    %v775 = vtanh.pop %v772
    %776 = vmatprep.subr.mxu0 0.0
    %777 = vmatpush1.msra.mxu0 %v235
    %778 = vmatprep.subr.mxu0 0.0
    %779 = vmatpush1.msra.mxu0 %v234
    %780 = vmatprep.subr.mxu0 0.0
    %781 = vmatpush1.msra.mxu0 %v233
    %782 = vmatprep.subr.mxu0 0.0
    %783 = vmatpush1.msra.mxu0 %v232
    %784 = vmatprep.subr.mxu0 0.0
    %785 = vmatpush1.msra.mxu0 %v231
    %786 = vmatprep.subr.mxu0 0.0
    %787 = vmatpush1.msra.mxu0 %v230
    %788 = vmatprep.subr.mxu0 0.0
    %789 = vmatpush1.msra.mxu0 %v229
    %790 = vmatprep.subr.mxu0 0.0
    %791 = vmatpush1.msra.mxu0 %v228
    %792 = vmatprep.subr.mxu0 0.0
    %793 = vmatpush1.msra.mxu0 %v227
    %794 = vmatprep.subr.mxu0 0.0
    %795 = vmatpush1.msra.mxu0 %v226
    %796 = vmatprep.subr.mxu0 0.0
    %797 = vmatpush1.msra.mxu0 %v225
    %798 = vmatprep.subr.mxu0 0.0
    %799 = vmatpush1.msra.mxu0 %v224
    %800 = vmatprep.subr.mxu0 0.0
    %801 = vmatpush1.msra.mxu0 %v223
    %802 = vmatprep.subr.mxu0 0.0
    %803 = vmatpush1.msra.mxu0 %v222
    %804 = vmatprep.subr.mxu0 0.0
    %805 = vmatpush1.msra.mxu0 %v221
    %806 = vmatprep.subr.mxu0 0.0
    %807 = vmatpush1.msra.mxu0 %v220
    %808 = vmatprep.subr.mxu0 0.0
    %809 = vmatpush2.msra.mxu0 0.0
    %810 = vmatprep.subr.mxu0 0.0
    %811 = vmatpush2.msra.mxu0 0.0
    %812 = vmatprep.subr.mxu0 0.0
    %813 = vmatpush2.msra.mxu0 0.0
    %814 = vmatprep.subr.mxu0 0.0
    %815 = vmatpush2.msra.mxu0 0.0
    %816 = vmatprep.subr.mxu0 0.0
    %817 = vmatpush2.msra.mxu0 0.0
    %818 = vmatprep.subr.mxu0 0.0
    %819 = vmatpush2.msra.mxu0 0.0
    %820 = vmatprep.subr.mxu0 0.0
    %821 = vmatpush2.msra.mxu0 0.0
    %822 = vmatprep.subr.mxu0 0.0
    %823 = vmatpush2.msra.mxu0 0.0
    %824 = vmatprep.subr.mxu0 0.0
    %825 = vmatpush2.msra.mxu0 0.0
    %826 = vmatprep.subr.mxu0 0.0
    %827 = vmatpush2.msra.mxu0 0.0
    %828 = vmatprep.subr.mxu0 0.0
    %829 = vmatpush2.msra.mxu0 0.0
    %830 = vmatprep.subr.mxu0 0.0
    %831 = vmatpush2.msra.mxu0 0.0
    %832 = vmatprep.subr.mxu0 0.0
    %833 = vmatpush2.msra.mxu0 0.0
    %834 = vmatprep.subr.mxu0 0.0
    %835 = vmatpush2.msra.mxu0 0.0
    %836 = vmatprep.subr.mxu0 0.0
    %837 = vmatpush2.msra.mxu0 0.0
    %838 = vmatprep.subr.mxu0 0.0
    %839 = vmatpush2.msra.mxu0 0.0
    %840 = vmatprep.mubr.f32.mxu0 0.0
    %841 = vmatmul.mubr.f32.gmra.mxu0 %v704
    %v842 = vpop.f32.mrf.mxu0
    %v843 = vadd.f32 0.0, %v842
    %v844 = vpop.f32.mrf.mxu0
    %845 = vdwg.mxu0
    %v846 = vadd.f32 %v202, %v843
    %v847 = vtanh.pop %v846
    %848 = vmatprep.subr.mxu0 0.0
    %849 = vmatpush1.msra.mxu0 %v395
    %850 = vmatprep.subr.mxu0 0.0
    %851 = vmatpush1.msra.mxu0 %v394
    %852 = vmatprep.subr.mxu0 0.0
    %853 = vmatpush1.msra.mxu0 %v393
    %854 = vmatprep.subr.mxu0 0.0
    %855 = vmatpush1.msra.mxu0 %v392
    %856 = vmatprep.subr.mxu0 0.0
    %857 = vmatpush1.msra.mxu0 %v391
    %858 = vmatprep.subr.mxu0 0.0
    %859 = vmatpush1.msra.mxu0 %v390
    %860 = vmatprep.subr.mxu0 0.0
    %861 = vmatpush1.msra.mxu0 %v389
    %862 = vmatprep.subr.mxu0 0.0
    %863 = vmatpush1.msra.mxu0 %v388
    %864 = vmatprep.subr.mxu0 0.0
    %865 = vmatpush1.msra.mxu0 %v387
    %866 = vmatprep.subr.mxu0 0.0
    %867 = vmatpush1.msra.mxu0 %v386
    %868 = vmatprep.subr.mxu0 0.0
    %869 = vmatpush1.msra.mxu0 %v385
    %870 = vmatprep.subr.mxu0 0.0
    %871 = vmatpush1.msra.mxu0 %v384
    %872 = vmatprep.subr.mxu0 0.0
    %873 = vmatpush1.msra.mxu0 %v383
    %874 = vmatprep.subr.mxu0 0.0
    %875 = vmatpush1.msra.mxu0 %v382
    %876 = vmatprep.subr.mxu0 0.0
    %877 = vmatpush1.msra.mxu0 %v381
    %878 = vmatprep.subr.mxu0 0.0
    %879 = vmatpush1.msra.mxu0 %v380
    %880 = vmatprep.subr.mxu0 0.0
    %881 = vmatpush2.msra.mxu0 %v411
    %882 = vmatprep.subr.mxu0 0.0
    %883 = vmatpush2.msra.mxu0 %v410
    %884 = vmatprep.subr.mxu0 0.0
    %885 = vmatpush2.msra.mxu0 %v409
    %886 = vmatprep.subr.mxu0 0.0
    %887 = vmatpush2.msra.mxu0 %v408
    %888 = vmatprep.subr.mxu0 0.0
    %889 = vmatpush2.msra.mxu0 %v407
    %890 = vmatprep.subr.mxu0 0.0
    %891 = vmatpush2.msra.mxu0 %v406
    %892 = vmatprep.subr.mxu0 0.0
    %893 = vmatpush2.msra.mxu0 %v405
    %894 = vmatprep.subr.mxu0 0.0
    %895 = vmatpush2.msra.mxu0 %v404
    %896 = vmatprep.subr.mxu0 0.0
    %897 = vmatpush2.msra.mxu0 %v403
    %898 = vmatprep.subr.mxu0 0.0
    %899 = vmatpush2.msra.mxu0 %v402
    %900 = vmatprep.subr.mxu0 0.0
    %901 = vmatpush2.msra.mxu0 %v401
    %902 = vmatprep.subr.mxu0 0.0
    %903 = vmatpush2.msra.mxu0 %v400
    %904 = vmatprep.subr.mxu0 0.0
    %905 = vmatpush2.msra.mxu0 %v399
    %906 = vmatprep.subr.mxu0 0.0
    %907 = vmatpush2.msra.mxu0 %v398
    %908 = vmatprep.subr.mxu0 0.0
    %909 = vmatpush2.msra.mxu0 %v397
    %910 = vmatprep.subr.mxu0 0.0
    %911 = vmatpush2.msra.mxu0 %v396
    %912 = vmatprep.mubr.f32.mxu0 %v775
    %913 = vmatmul.mubr.f32.gmra.mxu0 %v704
    %v914 = vpop.f32.mrf.mxu0
    %v915 = vadd.f32 %v417, %v914
    %v916 = vpop.f32.mrf.mxu0
    %917 = vdwg.mxu0
    %v918 = vtanh.pop %v915
    %919 = vmatprep.subr.mxu0 0.0
    %920 = vmatpush1.msra.mxu0 %v235
    %921 = vmatprep.subr.mxu0 0.0
    %922 = vmatpush1.msra.mxu0 %v234
    %923 = vmatprep.subr.mxu0 0.0
    %924 = vmatpush1.msra.mxu0 %v233
    %925 = vmatprep.subr.mxu0 0.0
    %926 = vmatpush1.msra.mxu0 %v232
    %927 = vmatprep.subr.mxu0 0.0
    %928 = vmatpush1.msra.mxu0 %v231
    %929 = vmatprep.subr.mxu0 0.0
    %930 = vmatpush1.msra.mxu0 %v230
    %931 = vmatprep.subr.mxu0 0.0
    %932 = vmatpush1.msra.mxu0 %v229
    %933 = vmatprep.subr.mxu0 0.0
    %934 = vmatpush1.msra.mxu0 %v228
    %935 = vmatprep.subr.mxu0 0.0
    %936 = vmatpush1.msra.mxu0 %v227
    %937 = vmatprep.subr.mxu0 0.0
    %938 = vmatpush1.msra.mxu0 %v226
    %939 = vmatprep.subr.mxu0 0.0
    %940 = vmatpush1.msra.mxu0 %v225
    %941 = vmatprep.subr.mxu0 0.0
    %942 = vmatpush1.msra.mxu0 %v224
    %943 = vmatprep.subr.mxu0 0.0
    %944 = vmatpush1.msra.mxu0 %v223
    %945 = vmatprep.subr.mxu0 0.0
    %946 = vmatpush1.msra.mxu0 %v222
    %947 = vmatprep.subr.mxu0 0.0
    %948 = vmatpush1.msra.mxu0 %v221
    %949 = vmatprep.subr.mxu0 0.0
    %950 = vmatpush1.msra.mxu0 %v220
    %951 = vmatprep.subr.mxu0 0.0
    %952 = vmatpush2.msra.mxu0 0.0
    %953 = vmatprep.subr.mxu0 0.0
    %954 = vmatpush2.msra.mxu0 0.0
    %955 = vmatprep.subr.mxu0 0.0
    %956 = vmatpush2.msra.mxu0 0.0
    %957 = vmatprep.subr.mxu0 0.0
    %958 = vmatpush2.msra.mxu0 0.0
    %959 = vmatprep.subr.mxu0 0.0
    %960 = vmatpush2.msra.mxu0 0.0
    %961 = vmatprep.subr.mxu0 0.0
    %962 = vmatpush2.msra.mxu0 0.0
    %963 = vmatprep.subr.mxu0 0.0
    %964 = vmatpush2.msra.mxu0 0.0
    %965 = vmatprep.subr.mxu0 0.0
    %966 = vmatpush2.msra.mxu0 0.0
    %967 = vmatprep.subr.mxu0 0.0
    %968 = vmatpush2.msra.mxu0 0.0
    %969 = vmatprep.subr.mxu0 0.0
    %970 = vmatpush2.msra.mxu0 0.0
    %971 = vmatprep.subr.mxu0 0.0
    %972 = vmatpush2.msra.mxu0 0.0
    %973 = vmatprep.subr.mxu0 0.0
    %974 = vmatpush2.msra.mxu0 0.0
    %975 = vmatprep.subr.mxu0 0.0
    %976 = vmatpush2.msra.mxu0 0.0
    %977 = vmatprep.subr.mxu0 0.0
    %978 = vmatpush2.msra.mxu0 0.0
    %979 = vmatprep.subr.mxu0 0.0
    %980 = vmatpush2.msra.mxu0 0.0
    %981 = vmatprep.subr.mxu0 0.0
    %982 = vmatpush2.msra.mxu0 0.0
    %983 = vmatprep.mubr.f32.mxu0 0.0
    %984 = vmatmul.mubr.f32.gmra.mxu0 %v847
    %v985 = vpop.f32.mrf.mxu0
    %v986 = vadd.f32 0.0, %v985
    %v987 = vpop.f32.mrf.mxu0
    %988 = vdwg.mxu0
    %v989 = vadd.f32 %v207, %v986
    %v990 = vtanh.pop %v989
    %991 = vmatprep.subr.mxu0 0.0
    %992 = vmatpush1.msra.mxu0 %v395
    %993 = vmatprep.subr.mxu0 0.0
    %994 = vmatpush1.msra.mxu0 %v394
    %995 = vmatprep.subr.mxu0 0.0
    %996 = vmatpush1.msra.mxu0 %v393
    %997 = vmatprep.subr.mxu0 0.0
    %998 = vmatpush1.msra.mxu0 %v392
    %999 = vmatprep.subr.mxu0 0.0
    %1000 = vmatpush1.msra.mxu0 %v391
    %1001 = vmatprep.subr.mxu0 0.0
    %1002 = vmatpush1.msra.mxu0 %v390
    %1003 = vmatprep.subr.mxu0 0.0
    %1004 = vmatpush1.msra.mxu0 %v389
    %1005 = vmatprep.subr.mxu0 0.0
    %1006 = vmatpush1.msra.mxu0 %v388
    %1007 = vmatprep.subr.mxu0 0.0
    %1008 = vmatpush1.msra.mxu0 %v387
    %1009 = vmatprep.subr.mxu0 0.0
    %1010 = vmatpush1.msra.mxu0 %v386
    %1011 = vmatprep.subr.mxu0 0.0
    %1012 = vmatpush1.msra.mxu0 %v385
    %1013 = vmatprep.subr.mxu0 0.0
    %1014 = vmatpush1.msra.mxu0 %v384
    %1015 = vmatprep.subr.mxu0 0.0
    %1016 = vmatpush1.msra.mxu0 %v383
    %1017 = vmatprep.subr.mxu0 0.0
    %1018 = vmatpush1.msra.mxu0 %v382
    %1019 = vmatprep.subr.mxu0 0.0
    %1020 = vmatpush1.msra.mxu0 %v381
    %1021 = vmatprep.subr.mxu0 0.0
    %1022 = vmatpush1.msra.mxu0 %v380
    %1023 = vmatprep.subr.mxu0 0.0
    %1024 = vmatpush2.msra.mxu0 %v411
    %1025 = vmatprep.subr.mxu0 0.0
    %1026 = vmatpush2.msra.mxu0 %v410
    %1027 = vmatprep.subr.mxu0 0.0
    %1028 = vmatpush2.msra.mxu0 %v409
    %1029 = vmatprep.subr.mxu0 0.0
    %1030 = vmatpush2.msra.mxu0 %v408
    %1031 = vmatprep.subr.mxu0 0.0
    %1032 = vmatpush2.msra.mxu0 %v407
    %1033 = vmatprep.subr.mxu0 0.0
    %1034 = vmatpush2.msra.mxu0 %v406
    %1035 = vmatprep.subr.mxu0 0.0
    %1036 = vmatpush2.msra.mxu0 %v405
    %1037 = vmatprep.subr.mxu0 0.0
    %1038 = vmatpush2.msra.mxu0 %v404
    %1039 = vmatprep.subr.mxu0 0.0
    %1040 = vmatpush2.msra.mxu0 %v403
    %1041 = vmatprep.subr.mxu0 0.0
    %1042 = vmatpush2.msra.mxu0 %v402
    %1043 = vmatprep.subr.mxu0 0.0
    %1044 = vmatpush2.msra.mxu0 %v401
    %1045 = vmatprep.subr.mxu0 0.0
    %1046 = vmatpush2.msra.mxu0 %v400
    %1047 = vmatprep.subr.mxu0 0.0
    %1048 = vmatpush2.msra.mxu0 %v399
    %1049 = vmatprep.subr.mxu0 0.0
    %1050 = vmatpush2.msra.mxu0 %v398
    %1051 = vmatprep.subr.mxu0 0.0
    %1052 = vmatpush2.msra.mxu0 %v397
    %1053 = vmatprep.subr.mxu0 0.0
    %1054 = vmatpush2.msra.mxu0 %v396
    %1055 = vmatprep.mubr.f32.mxu0 %v918
    %1056 = vmatmul.mubr.f32.gmra.mxu0 %v847
    %v1057 = vpop.f32.mrf.mxu0
    %v1058 = vadd.f32 %v417, %v1057
    %v1059 = vpop.f32.mrf.mxu0
    %1060 = vdwg.mxu0
    %v1061 = vtanh.pop %v1058
    %1062 = vmatprep.subr.mxu0 0.0
    %1063 = vmatpush1.msra.mxu0 %v235
    %1064 = vmatprep.subr.mxu0 0.0
    %1065 = vmatpush1.msra.mxu0 %v234
    %1066 = vmatprep.subr.mxu0 0.0
    %1067 = vmatpush1.msra.mxu0 %v233
    %1068 = vmatprep.subr.mxu0 0.0
    %1069 = vmatpush1.msra.mxu0 %v232
    %1070 = vmatprep.subr.mxu0 0.0
    %1071 = vmatpush1.msra.mxu0 %v231
    %1072 = vmatprep.subr.mxu0 0.0
    %1073 = vmatpush1.msra.mxu0 %v230
    %1074 = vmatprep.subr.mxu0 0.0
    %1075 = vmatpush1.msra.mxu0 %v229
    %1076 = vmatprep.subr.mxu0 0.0
    %1077 = vmatpush1.msra.mxu0 %v228
    %1078 = vmatprep.subr.mxu0 0.0
    %1079 = vmatpush1.msra.mxu0 %v227
    %1080 = vmatprep.subr.mxu0 0.0
    %1081 = vmatpush1.msra.mxu0 %v226
    %1082 = vmatprep.subr.mxu0 0.0
    %1083 = vmatpush1.msra.mxu0 %v225
    %1084 = vmatprep.subr.mxu0 0.0
    %1085 = vmatpush1.msra.mxu0 %v224
    %1086 = vmatprep.subr.mxu0 0.0
    %1087 = vmatpush1.msra.mxu0 %v223
    %1088 = vmatprep.subr.mxu0 0.0
    %1089 = vmatpush1.msra.mxu0 %v222
    %1090 = vmatprep.subr.mxu0 0.0
    %1091 = vmatpush1.msra.mxu0 %v221
    %1092 = vmatprep.subr.mxu0 0.0
    %1093 = vmatpush1.msra.mxu0 %v220
    %1094 = vmatprep.subr.mxu0 0.0
    %1095 = vmatpush2.msra.mxu0 0.0
    %1096 = vmatprep.subr.mxu0 0.0
    %1097 = vmatpush2.msra.mxu0 0.0
    %1098 = vmatprep.subr.mxu0 0.0
    %1099 = vmatpush2.msra.mxu0 0.0
    %1100 = vmatprep.subr.mxu0 0.0
    %1101 = vmatpush2.msra.mxu0 0.0
    %1102 = vmatprep.subr.mxu0 0.0
    %1103 = vmatpush2.msra.mxu0 0.0
    %1104 = vmatprep.subr.mxu0 0.0
    %1105 = vmatpush2.msra.mxu0 0.0
    %1106 = vmatprep.subr.mxu0 0.0
    %1107 = vmatpush2.msra.mxu0 0.0
    %1108 = vmatprep.subr.mxu0 0.0
    %1109 = vmatpush2.msra.mxu0 0.0
    %1110 = vmatprep.subr.mxu0 0.0
    %1111 = vmatpush2.msra.mxu0 0.0
    %1112 = vmatprep.subr.mxu0 0.0
    %1113 = vmatpush2.msra.mxu0 0.0
    %1114 = vmatprep.subr.mxu0 0.0
    %1115 = vmatpush2.msra.mxu0 0.0
    %1116 = vmatprep.subr.mxu0 0.0
    %1117 = vmatpush2.msra.mxu0 0.0
    %1118 = vmatprep.subr.mxu0 0.0
    %1119 = vmatpush2.msra.mxu0 0.0
    %1120 = vmatprep.subr.mxu0 0.0
    %1121 = vmatpush2.msra.mxu0 0.0
    %1122 = vmatprep.subr.mxu0 0.0
    %1123 = vmatpush2.msra.mxu0 0.0
    %1124 = vmatprep.subr.mxu0 0.0
    %1125 = vmatpush2.msra.mxu0 0.0
    %1126 = vmatprep.mubr.f32.mxu0 0.0
    %1127 = vmatmul.mubr.f32.gmra.mxu0 %v990
    %v1128 = vpop.f32.mrf.mxu0
    %v1129 = vadd.f32 0.0, %v1128
    %v1130 = vpop.f32.mrf.mxu0
    %1131 = vdwg.mxu0
    %v1132 = vadd.f32 %v212, %v1129
    %v1133 = vtanh.pop %v1132
    %1134 = vmatprep.subr.mxu0 0.0
    %1135 = vmatpush1.msra.mxu0 %v395
    %1136 = vmatprep.subr.mxu0 0.0
    %1137 = vmatpush1.msra.mxu0 %v394
    %1138 = vmatprep.subr.mxu0 0.0
    %1139 = vmatpush1.msra.mxu0 %v393
    %1140 = vmatprep.subr.mxu0 0.0
    %1141 = vmatpush1.msra.mxu0 %v392
    %1142 = vmatprep.subr.mxu0 0.0
    %1143 = vmatpush1.msra.mxu0 %v391
    %1144 = vmatprep.subr.mxu0 0.0
    %1145 = vmatpush1.msra.mxu0 %v390
    %1146 = vmatprep.subr.mxu0 0.0
    %1147 = vmatpush1.msra.mxu0 %v389
    %1148 = vmatprep.subr.mxu0 0.0
    %1149 = vmatpush1.msra.mxu0 %v388
    %1150 = vmatprep.subr.mxu0 0.0
    %1151 = vmatpush1.msra.mxu0 %v387
    %1152 = vmatprep.subr.mxu0 0.0
    %1153 = vmatpush1.msra.mxu0 %v386
    %1154 = vmatprep.subr.mxu0 0.0
    %1155 = vmatpush1.msra.mxu0 %v385
    %1156 = vmatprep.subr.mxu0 0.0
    %1157 = vmatpush1.msra.mxu0 %v384
    %1158 = vmatprep.subr.mxu0 0.0
    %1159 = vmatpush1.msra.mxu0 %v383
    %1160 = vmatprep.subr.mxu0 0.0
    %1161 = vmatpush1.msra.mxu0 %v382
    %1162 = vmatprep.subr.mxu0 0.0
    %1163 = vmatpush1.msra.mxu0 %v381
    %1164 = vmatprep.subr.mxu0 0.0
    %1165 = vmatpush1.msra.mxu0 %v380
    %1166 = vmatprep.subr.mxu0 0.0
    %1167 = vmatpush2.msra.mxu0 %v411
    %1168 = vmatprep.subr.mxu0 0.0
    %1169 = vmatpush2.msra.mxu0 %v410
    %1170 = vmatprep.subr.mxu0 0.0
    %1171 = vmatpush2.msra.mxu0 %v409
    %1172 = vmatprep.subr.mxu0 0.0
    %1173 = vmatpush2.msra.mxu0 %v408
    %1174 = vmatprep.subr.mxu0 0.0
    %1175 = vmatpush2.msra.mxu0 %v407
    %1176 = vmatprep.subr.mxu0 0.0
    %1177 = vmatpush2.msra.mxu0 %v406
    %1178 = vmatprep.subr.mxu0 0.0
    %1179 = vmatpush2.msra.mxu0 %v405
    %1180 = vmatprep.subr.mxu0 0.0
    %1181 = vmatpush2.msra.mxu0 %v404
    %1182 = vmatprep.subr.mxu0 0.0
    %1183 = vmatpush2.msra.mxu0 %v403
    %1184 = vmatprep.subr.mxu0 0.0
    %1185 = vmatpush2.msra.mxu0 %v402
    %1186 = vmatprep.subr.mxu0 0.0
    %1187 = vmatpush2.msra.mxu0 %v401
    %1188 = vmatprep.subr.mxu0 0.0
    %1189 = vmatpush2.msra.mxu0 %v400
    %1190 = vmatprep.subr.mxu0 0.0
    %1191 = vmatpush2.msra.mxu0 %v399
    %1192 = vmatprep.subr.mxu0 0.0
    %1193 = vmatpush2.msra.mxu0 %v398
    %1194 = vmatprep.subr.mxu0 0.0
    %1195 = vmatpush2.msra.mxu0 %v397
    %1196 = vmatprep.subr.mxu0 0.0
    %1197 = vmatpush2.msra.mxu0 %v396
    %1198 = vmatprep.mubr.f32.mxu0 %v1061
    %1199 = vmatmul.mubr.f32.gmra.mxu0 %v990
    %v1200 = vpop.f32.mrf.mxu0
    %v1201 = vadd.f32 %v417, %v1200
    %v1202 = vpop.f32.mrf.mxu0
    %1203 = vdwg.mxu0
    %v1204 = vtanh.pop %v1201
    %1205 = vmatprep.subr.mxu0 0.0
    %1206 = vmatpush1.msra.mxu0 %v235
    %1207 = vmatprep.subr.mxu0 0.0
    %1208 = vmatpush1.msra.mxu0 %v234
    %1209 = vmatprep.subr.mxu0 0.0
    %1210 = vmatpush1.msra.mxu0 %v233
    %1211 = vmatprep.subr.mxu0 0.0
    %1212 = vmatpush1.msra.mxu0 %v232
    %1213 = vmatprep.subr.mxu0 0.0
    %1214 = vmatpush1.msra.mxu0 %v231
    %1215 = vmatprep.subr.mxu0 0.0
    %1216 = vmatpush1.msra.mxu0 %v230
    %1217 = vmatprep.subr.mxu0 0.0
    %1218 = vmatpush1.msra.mxu0 %v229
    %1219 = vmatprep.subr.mxu0 0.0
    %1220 = vmatpush1.msra.mxu0 %v228
    %1221 = vmatprep.subr.mxu0 0.0
    %1222 = vmatpush1.msra.mxu0 %v227
    %1223 = vmatprep.subr.mxu0 0.0
    %1224 = vmatpush1.msra.mxu0 %v226
    %1225 = vmatprep.subr.mxu0 0.0
    %1226 = vmatpush1.msra.mxu0 %v225
    %1227 = vmatprep.subr.mxu0 0.0
    %1228 = vmatpush1.msra.mxu0 %v224
    %1229 = vmatprep.subr.mxu0 0.0
    %1230 = vmatpush1.msra.mxu0 %v223
    %1231 = vmatprep.subr.mxu0 0.0
    %1232 = vmatpush1.msra.mxu0 %v222
    %1233 = vmatprep.subr.mxu0 0.0
    %1234 = vmatpush1.msra.mxu0 %v221
    %1235 = vmatprep.subr.mxu0 0.0
    %1236 = vmatpush1.msra.mxu0 %v220
    %1237 = vmatprep.subr.mxu0 0.0
    %1238 = vmatpush2.msra.mxu0 0.0
    %1239 = vmatprep.subr.mxu0 0.0
    %1240 = vmatpush2.msra.mxu0 0.0
    %1241 = vmatprep.subr.mxu0 0.0
    %1242 = vmatpush2.msra.mxu0 0.0
    %1243 = vmatprep.subr.mxu0 0.0
    %1244 = vmatpush2.msra.mxu0 0.0
    %1245 = vmatprep.subr.mxu0 0.0
    %1246 = vmatpush2.msra.mxu0 0.0
    %1247 = vmatprep.subr.mxu0 0.0
    %1248 = vmatpush2.msra.mxu0 0.0
    %1249 = vmatprep.subr.mxu0 0.0
    %1250 = vmatpush2.msra.mxu0 0.0
    %1251 = vmatprep.subr.mxu0 0.0
    %1252 = vmatpush2.msra.mxu0 0.0
    %1253 = vmatprep.subr.mxu0 0.0
    %1254 = vmatpush2.msra.mxu0 0.0
    %1255 = vmatprep.subr.mxu0 0.0
    %1256 = vmatpush2.msra.mxu0 0.0
    %1257 = vmatprep.subr.mxu0 0.0
    %1258 = vmatpush2.msra.mxu0 0.0
    %1259 = vmatprep.subr.mxu0 0.0
    %1260 = vmatpush2.msra.mxu0 0.0
    %1261 = vmatprep.subr.mxu0 0.0
    %1262 = vmatpush2.msra.mxu0 0.0
    %1263 = vmatprep.subr.mxu0 0.0
    %1264 = vmatpush2.msra.mxu0 0.0
    %1265 = vmatprep.subr.mxu0 0.0
    %1266 = vmatpush2.msra.mxu0 0.0
    %1267 = vmatprep.subr.mxu0 0.0
    %1268 = vmatpush2.msra.mxu0 0.0
    %1269 = vmatprep.mubr.f32.mxu0 0.0
    %1270 = vmatmul.mubr.f32.gmra.mxu0 %v1133
    %v1271 = vpop.f32.mrf.mxu0
    %v1272 = vadd.f32 0.0, %v1271
    %v1273 = vpop.f32.mrf.mxu0
    %1274 = vdwg.mxu0
    %v1275 = vadd.f32 %v217, %v1272
    %v1276 = vtanh.pop %v1275
    %1277 = vmatprep.subr.mxu0 0.0
    %1278 = vmatpush1.msra.mxu0 %v395
    %1279 = vmatprep.subr.mxu0 0.0
    %1280 = vmatpush1.msra.mxu0 %v394
    %1281 = vmatprep.subr.mxu0 0.0
    %1282 = vmatpush1.msra.mxu0 %v393
    %1283 = vmatprep.subr.mxu0 0.0
    %1284 = vmatpush1.msra.mxu0 %v392
    %1285 = vmatprep.subr.mxu0 0.0
    %1286 = vmatpush1.msra.mxu0 %v391
    %1287 = vmatprep.subr.mxu0 0.0
    %1288 = vmatpush1.msra.mxu0 %v390
    %1289 = vmatprep.subr.mxu0 0.0
    %1290 = vmatpush1.msra.mxu0 %v389
    %1291 = vmatprep.subr.mxu0 0.0
    %1292 = vmatpush1.msra.mxu0 %v388
    %1293 = vmatprep.subr.mxu0 0.0
    %1294 = vmatpush1.msra.mxu0 %v387
    %1295 = vmatprep.subr.mxu0 0.0
    %1296 = vmatpush1.msra.mxu0 %v386
    %1297 = vmatprep.subr.mxu0 0.0
    %1298 = vmatpush1.msra.mxu0 %v385
    %1299 = vmatprep.subr.mxu0 0.0
    %1300 = vmatpush1.msra.mxu0 %v384
    %1301 = vmatprep.subr.mxu0 0.0
    %1302 = vmatpush1.msra.mxu0 %v383
    %1303 = vmatprep.subr.mxu0 0.0
    %1304 = vmatpush1.msra.mxu0 %v382
    %1305 = vmatprep.subr.mxu0 0.0
    %1306 = vmatpush1.msra.mxu0 %v381
    %1307 = vmatprep.subr.mxu0 0.0
    %1308 = vmatpush1.msra.mxu0 %v380
    %1309 = vmatprep.subr.mxu0 0.0
    %1310 = vmatpush2.msra.mxu0 %v411
    %1311 = vmatprep.subr.mxu0 0.0
    %1312 = vmatpush2.msra.mxu0 %v410
    %1313 = vmatprep.subr.mxu0 0.0
    %1314 = vmatpush2.msra.mxu0 %v409
    %1315 = vmatprep.subr.mxu0 0.0
    %1316 = vmatpush2.msra.mxu0 %v408
    %1317 = vmatprep.subr.mxu0 0.0
    %1318 = vmatpush2.msra.mxu0 %v407
    %1319 = vmatprep.subr.mxu0 0.0
    %1320 = vmatpush2.msra.mxu0 %v406
    %1321 = vmatprep.subr.mxu0 0.0
    %1322 = vmatpush2.msra.mxu0 %v405
    %1323 = vmatprep.subr.mxu0 0.0
    %1324 = vmatpush2.msra.mxu0 %v404
    %1325 = vmatprep.subr.mxu0 0.0
    %1326 = vmatpush2.msra.mxu0 %v403
    %1327 = vmatprep.subr.mxu0 0.0
    %1328 = vmatpush2.msra.mxu0 %v402
    %1329 = vmatprep.subr.mxu0 0.0
    %1330 = vmatpush2.msra.mxu0 %v401
    %1331 = vmatprep.subr.mxu0 0.0
    %1332 = vmatpush2.msra.mxu0 %v400
    %1333 = vmatprep.subr.mxu0 0.0
    %1334 = vmatpush2.msra.mxu0 %v399
    %1335 = vmatprep.subr.mxu0 0.0
    %1336 = vmatpush2.msra.mxu0 %v398
    %1337 = vmatprep.subr.mxu0 0.0
    %1338 = vmatpush2.msra.mxu0 %v397
    %1339 = vmatprep.subr.mxu0 0.0
    %1340 = vmatpush2.msra.mxu0 %v396
    %1341 = vmatprep.mubr.f32.mxu0 %v1204
    %1342 = vmatmul.mubr.f32.gmra.mxu0 %v1133
    %v1343 = vpop.f32.mrf.mxu0
    %v1344 = vadd.f32 %v417, %v1343
    %v1345 = vpop.f32.mrf.mxu0
    %1346 = vdwg.mxu0
    %v1347 = vtanh.pop %v1344
    %1348 = vmatprep.subr.mxu0 0.0
    %1349 = vmatpush1.msra.mxu0 %v395
    %1350 = vmatprep.subr.mxu0 0.0
    %1351 = vmatpush1.msra.mxu0 %v394
    %1352 = vmatprep.subr.mxu0 0.0
    %1353 = vmatpush1.msra.mxu0 %v393
    %1354 = vmatprep.subr.mxu0 0.0
    %1355 = vmatpush1.msra.mxu0 %v392
    %1356 = vmatprep.subr.mxu0 0.0
    %1357 = vmatpush1.msra.mxu0 %v391
    %1358 = vmatprep.subr.mxu0 0.0
    %1359 = vmatpush1.msra.mxu0 %v390
    %1360 = vmatprep.subr.mxu0 0.0
    %1361 = vmatpush1.msra.mxu0 %v389
    %1362 = vmatprep.subr.mxu0 0.0
    %1363 = vmatpush1.msra.mxu0 %v388
    %1364 = vmatprep.subr.mxu0 0.0
    %1365 = vmatpush1.msra.mxu0 %v387
    %1366 = vmatprep.subr.mxu0 0.0
    %1367 = vmatpush1.msra.mxu0 %v386
    %1368 = vmatprep.subr.mxu0 0.0
    %1369 = vmatpush1.msra.mxu0 %v385
    %1370 = vmatprep.subr.mxu0 0.0
    %1371 = vmatpush1.msra.mxu0 %v384
    %1372 = vmatprep.subr.mxu0 0.0
    %1373 = vmatpush1.msra.mxu0 %v383
    %1374 = vmatprep.subr.mxu0 0.0
    %1375 = vmatpush1.msra.mxu0 %v382
    %1376 = vmatprep.subr.mxu0 0.0
    %1377 = vmatpush1.msra.mxu0 %v381
    %1378 = vmatprep.subr.mxu0 0.0
    %1379 = vmatpush1.msra.mxu0 %v380
    %1380 = vmatprep.subr.mxu0 0.0
    %1381 = vmatpush2.msra.mxu0 %v411
    %1382 = vmatprep.subr.mxu0 0.0
    %1383 = vmatpush2.msra.mxu0 %v410
    %1384 = vmatprep.subr.mxu0 0.0
    %1385 = vmatpush2.msra.mxu0 %v409
    %1386 = vmatprep.subr.mxu0 0.0
    %1387 = vmatpush2.msra.mxu0 %v408
    %1388 = vmatprep.subr.mxu0 0.0
    %1389 = vmatpush2.msra.mxu0 %v407
    %1390 = vmatprep.subr.mxu0 0.0
    %1391 = vmatpush2.msra.mxu0 %v406
    %1392 = vmatprep.subr.mxu0 0.0
    %1393 = vmatpush2.msra.mxu0 %v405
    %1394 = vmatprep.subr.mxu0 0.0
    %1395 = vmatpush2.msra.mxu0 %v404
    %1396 = vmatprep.subr.mxu0 0.0
    %1397 = vmatpush2.msra.mxu0 %v403
    %1398 = vmatprep.subr.mxu0 0.0
    %1399 = vmatpush2.msra.mxu0 %v402
    %1400 = vmatprep.subr.mxu0 0.0
    %1401 = vmatpush2.msra.mxu0 %v401
    %1402 = vmatprep.subr.mxu0 0.0
    %1403 = vmatpush2.msra.mxu0 %v400
    %1404 = vmatprep.subr.mxu0 0.0
    %1405 = vmatpush2.msra.mxu0 %v399
    %1406 = vmatprep.subr.mxu0 0.0
    %1407 = vmatpush2.msra.mxu0 %v398
    %1408 = vmatprep.subr.mxu0 0.0
    %1409 = vmatpush2.msra.mxu0 %v397
    %1410 = vmatprep.subr.mxu0 0.0
    %1411 = vmatpush2.msra.mxu0 %v396
    %1412 = vmatprep.mubr.f32.mxu0 %v1347
    %1413 = vmatmul.mubr.f32.gmra.mxu0 %v1276
    %v1414 = vpop.f32.mrf.mxu0
    %v1415 = vadd.f32 %v417, %v1414
    %v1416 = vpop.f32.mrf.mxu0
    %1417 = vdwg.mxu0
    %v1418 = vtanh.pop %v1415
    %v1419 = vld [vmem:[#allocation7] sm:$0xff]
    %v1420 = vld [vmem:[#allocation7 + $0x8] sm:$0xff]
    %v1421 = vld [vmem:[#allocation7 + $0x10] sm:$0xff]
    %v1422 = vld [vmem:[#allocation7 + $0x18] sm:$0xff]
    %v1423 = vld [vmem:[#allocation7 + $0x20] sm:$0xff]
    %v1424 = vld [vmem:[#allocation7 + $0x28] sm:$0xff]
    %v1425 = vld [vmem:[#allocation7 + $0x30] sm:$0xff]
    %v1426 = vld [vmem:[#allocation7 + $0x38] sm:$0xff]
    %v1427 = vld [vmem:[#allocation7 + $0x40] sm:$0xff]
    %v1428 = vld [vmem:[#allocation7 + $0x48] sm:$0xff]
    %v1429 = vld [vmem:[#allocation7 + $0x50] sm:$0xff]
    %v1430 = vld [vmem:[#allocation7 + $0x58] sm:$0xff]
    %v1431 = vld [vmem:[#allocation7 + $0x60] sm:$0xff]
    %v1432 = vld [vmem:[#allocation7 + $0x68] sm:$0xff]
    %v1433 = vld [vmem:[#allocation7 + $0x70] sm:$0xff]
    %v1434 = vld [vmem:[#allocation7 + $0x78] sm:$0xff]
    %v1435 = vld [vmem:[%s7] sm:$0x1]
    %v1437 = vlaneseq
    %v1438 = vshrl.u32 %v1437, 7
    %v1439 = vsub.s32 0, %v1438
    %v1440 = vrot.slane %v1435, %v1439
    %1442 = vmatprep.subr.mxu0 0.0
    %1443 = vmatpush1.msra.mxu0 %v1434
    %1444 = vmatprep.subr.mxu0 0.0
    %1445 = vmatpush1.msra.mxu0 %v1433
    %1446 = vmatprep.subr.mxu0 0.0
    %1447 = vmatpush1.msra.mxu0 %v1432
    %1448 = vmatprep.subr.mxu0 0.0
    %1449 = vmatpush1.msra.mxu0 %v1431
    %1450 = vmatprep.subr.mxu0 0.0
    %1451 = vmatpush1.msra.mxu0 %v1430
    %1452 = vmatprep.subr.mxu0 0.0
    %1453 = vmatpush1.msra.mxu0 %v1429
    %1454 = vmatprep.subr.mxu0 0.0
    %1455 = vmatpush1.msra.mxu0 %v1428
    %1456 = vmatprep.subr.mxu0 0.0
    %1457 = vmatpush1.msra.mxu0 %v1427
    %1458 = vmatprep.subr.mxu0 0.0
    %1459 = vmatpush1.msra.mxu0 %v1426
    %1460 = vmatprep.subr.mxu0 0.0
    %1461 = vmatpush1.msra.mxu0 %v1425
    %1462 = vmatprep.subr.mxu0 0.0
    %1463 = vmatpush1.msra.mxu0 %v1424
    %1464 = vmatprep.subr.mxu0 0.0
    %1465 = vmatpush1.msra.mxu0 %v1423
    %1466 = vmatprep.subr.mxu0 0.0
    %1467 = vmatpush1.msra.mxu0 %v1422
    %1468 = vmatprep.subr.mxu0 0.0
    %1469 = vmatpush1.msra.mxu0 %v1421
    %1470 = vmatprep.subr.mxu0 0.0
    %1471 = vmatpush1.msra.mxu0 %v1420
    %1472 = vmatprep.subr.mxu0 0.0
    %1473 = vmatpush1.msra.mxu0 %v1419
    %1474 = vmatprep.subr.mxu0 0.0
    %1475 = vmatpush2.msra.mxu0 0.0
    %1476 = vmatprep.subr.mxu0 0.0
    %1477 = vmatpush2.msra.mxu0 0.0
    %1478 = vmatprep.subr.mxu0 0.0
    %1479 = vmatpush2.msra.mxu0 0.0
    %1480 = vmatprep.subr.mxu0 0.0
    %1481 = vmatpush2.msra.mxu0 0.0
    %1482 = vmatprep.subr.mxu0 0.0
    %1483 = vmatpush2.msra.mxu0 0.0
    %1484 = vmatprep.subr.mxu0 0.0
    %1485 = vmatpush2.msra.mxu0 0.0
    %1486 = vmatprep.subr.mxu0 0.0
    %1487 = vmatpush2.msra.mxu0 0.0
    %1488 = vmatprep.subr.mxu0 0.0
    %1489 = vmatpush2.msra.mxu0 0.0
    %1490 = vmatprep.subr.mxu0 0.0
    %1491 = vmatpush2.msra.mxu0 0.0
    %1492 = vmatprep.subr.mxu0 0.0
    %1493 = vmatpush2.msra.mxu0 0.0
    %1494 = vmatprep.subr.mxu0 0.0
    %1495 = vmatpush2.msra.mxu0 0.0
    %1496 = vmatprep.subr.mxu0 0.0
    %1497 = vmatpush2.msra.mxu0 0.0
    %1498 = vmatprep.subr.mxu0 0.0
    %1499 = vmatpush2.msra.mxu0 0.0
    %1500 = vmatprep.subr.mxu0 0.0
    %1501 = vmatpush2.msra.mxu0 0.0
    %1502 = vmatprep.subr.mxu0 0.0
    %1503 = vmatpush2.msra.mxu0 0.0
    %1504 = vmatprep.subr.mxu0 0.0
    %1505 = vmatpush2.msra.mxu0 0.0
    %1506 = vmatprep.mubr.f32.mxu0 0.0
    %1507 = vmatmul.mubr.f32.gmra.mxu0 %v1418
    %v1508 = vpop.f32.mrf.mxu0
    %v1509 = vadd.f32 %v1440, %v1508
    %v1510 = vpop.f32.mrf.mxu0
    %1511 = vdwg.mxu0
    %1512 = vst [vmem:[%s8] sm:$0xff] %v1509
    // Predicated region
    $region50: #{rnn_model_forward.1} parent=1 // pred_check
      _
    $region51: #{rnn_model_forward.1} parent=1 // pred_check_branch
      %1514 = sbr.rel (0) target = $region53
    $region52: #{rnn_model_forward.1} parent=1 // pred_region
      _
    $region53: #{rnn_model_forward.1} parent=1 // pred_fallthru
      _
    // Predicated region
    $region54: #{rnn_model_forward.1} parent=1 // pred_check
      _
    $region55: #{rnn_model_forward.1} parent=1 // pred_check_branch
      %1516 = sbr.rel (0) target = $region57
    $region56: #{rnn_model_forward.1} parent=1 // pred_region
      _
    $region57: #{rnn_model_forward.1} parent=1 // pred_fallthru
      _
    %1517 = vsyncpa [#allocation3], 1
    %1518 = vsyncpa [#allocation5], 1
    %1519 = vsyncpa [#allocation8], 1

</llo_original>
